<compile_context>
chip_gen: v6e
topology: v6e:2x2x1
jax: 0.10.0
libtpu: 0.0.40
codegen_flags: <defaults>
</compile_context>

<pallas_src>
import functools

import jax
import jax.numpy as jnp
from jax.experimental import pallas as pl
from jax.experimental.pallas import tpu as pltpu

_EPS = 1e-5


# ----------------------------------------------------------------------------
# Fused kernel: conv1+BN+ReLU -> deconv(3x3,s2)+BN+ReLU -> conv3+BN+ReLU
# ----------------------------------------------------------------------------
def decoder_block_kernel(x_ref, xh_ref, w1_ref, b1_ref, wd_ref, b2_ref,
                         w3_ref, b3_ref, o_ref, *, TH, W):
    """One (batch, row-tile) grid step; all intermediates stay on-chip.

    x_ref : (1, TH*W, Cin)    bf16 tile rows (NHWC, spatial flattened row-major)
    xh_ref: (1, W, Cin)       bf16 halo = first image row of the NEXT tile
                              (clamped at the bottom; zeroed below on last tile)
    w1_ref: (Cin, Cmid)       bf16 1x1 conv weight, BN1 scale folded in
    b1_ref: (1, Cmid)         f32 folded BN1 shift (conv1 bias included)
    wd_ref: (4*Cmid, 4*Cmid)  bf16 transposed-conv taps, BN2 scale folded in.
                              Row blocks = 2x2 shift neighbourhood (dy,dx),
                              column blocks = 2x2 output sub-pixel (py,px).
    b2_ref: (1, 4*Cmid)       f32 folded BN2 shift, tiled over sub-pixels
    w3_ref: (4*Cmid, 4*Cout)  bf16 block_diag(W3 x4), BN3 scale folded in
    b3_ref: (1, 4*Cout)       f32 folded BN3 shift, tiled over sub-pixels
    o_ref : (1, TH*W, 4*Cout) f32 output; column = (py*2+px)*Cout + c (lane dense)
    """
    Cmid = w1_ref.shape[1]
    THW = TH * W
    f32 = jnp.float32
    bf16 = jnp.bfloat16

    is_last_tile = pl.program_id(1) == pl.num_programs(1) - 1

    # ---- conv1 (1x1) + folded BN1 + ReLU on tile rows + the 1-row halo -------
    xext = jnp.concatenate([x_ref[0], xh_ref[0]], axis=0)         # (THW+W, Cin)
    ext = jnp.dot(xext, w1_ref[...], preferred_element_type=f32)
    ext = jnp.maximum(ext + b1_ref[...], 0.0)                     # (THW+W, Cmid)

    # Zero the halo row when this is the image's bottom tile (it was fetched
    # with a clamped index); this reproduces the transposed conv's zero pad.
    row = jax.lax.broadcasted_iota(jnp.int32, (THW + W, 1), 0)
    ext = jnp.where(jnp.logical_and(row >= THW, is_last_tile), 0.0, ext)

    # One extra zero row-block so every shifted neighbour below is a plain
    # static slice (no wrap-around / cyclic rotate required).
    ext = jnp.concatenate([ext, jnp.zeros((W, Cmid), f32)], axis=0)

    # ---- 2x2 shift neighbourhood of h1 (no padded scratch, no 3-D reshape) ---
    k = jax.lax.broadcasted_iota(jnp.int32, (THW, 1), 0)
    not_last_col = (k % W) != (W - 1)                             # j != W-1

    h00 = ext[0:THW]                                              # h[i  , j  ]
    h01 = jnp.where(not_last_col, ext[1:THW + 1], 0.0)            # h[i  , j+1]
    h10 = ext[W:THW + W]                                          # h[i+1, j  ]
    h11 = jnp.where(not_last_col, ext[W + 1:THW + W + 1], 0.0)    # h[i+1, j+1]

    # ---- transposed conv 3x3 stride 2 (+ folded BN2) + ReLU: 4 MXU matmuls ---
    d = jnp.dot(h00.astype(bf16), wd_ref[0 * Cmid:1 * Cmid, :],
                preferred_element_type=f32)
    d += jnp.dot(h01.astype(bf16), wd_ref[1 * Cmid:2 * Cmid, :],
                 preferred_element_type=f32)
    d += jnp.dot(h10.astype(bf16), wd_ref[2 * Cmid:3 * Cmid, :],
                 preferred_element_type=f32)
    d += jnp.dot(h11.astype(bf16), wd_ref[3 * Cmid:4 * Cmid, :],
                 preferred_element_type=f32)
    d = jnp.maximum(d + b2_ref[...], 0.0)                         # (THW, 4*Cmid)

    # ---- conv3 (1x1, block-diagonal over sub-pixels) + folded BN3 + ReLU -----
    y = jnp.dot(d.astype(bf16), w3_ref[...], preferred_element_type=f32)
    y = jnp.maximum(y + b3_ref[...], 0.0)                         # (THW, 4*Cout)
    o_ref[0] = y.astype(o_ref.dtype)


# ----------------------------------------------------------------------------
# Wrapper
# ----------------------------------------------------------------------------
def decoder_block_forward(x_nchw, kp, *, row_tile=None):
    """Pallas DecoderBlock forward. x_nchw: (N, Cin, H, W) -> (N, Cout, 2H, 2W)."""
    N, Cin, H, W = x_nchw.shape
    Cmid = kp["w1"].shape[1]
    Cout4 = kp["w3"].shape[1]
    Cout = Cout4 // 4

    TH = row_tile
    if TH is None:
        TH = H
        if H > 8:
            for cand in (8, 4, 2):
                if H % cand == 0:
                    TH = cand
                    break
    assert H % TH == 0, (H, TH)
    assert W % 8 == 0, W          # halo block needs sublane-aligned rows
    n_tiles = H // TH
    THW = TH * W

    # NCHW -> NHWC -> (N, H*W, Cin); bf16 feed halves the HBM->VMEM DMA.
    x = jnp.transpose(x_nchw, (0, 2, 3, 1)).reshape(N, H * W, Cin)
    x = x.astype(jnp.bfloat16)

    kernel = functools.partial(decoder_block_kernel, TH=TH, W=W)
    # NOTE: weight/bias operands have constant index maps, so Pallas only
    # fetches them once; pl.Buffered(1)/scratch preload would merely trim VMEM
    # headroom on v7x at much larger shapes.
    # TODO(synk): at large H*W*Cin set vmem_limit_bytes and shrink TH so the
    # double-buffered activation blocks fit v5e's 16 MiB scoped-VMEM default.
    out = pl.pallas_call(
        kernel,
        out_shape=jax.ShapeDtypeStruct((N, H * W, Cout4), jnp.float32),
        grid=(N, n_tiles),
        in_specs=[
            pl.BlockSpec((1, THW, Cin), lambda n, t: (n, t, 0)),
            # Halo: first image row of the next tile (block unit = 1 image row).
            # Clamped at the bottom edge; the kernel zeroes it on the last tile.
            pl.BlockSpec((1, W, Cin),
                         lambda n, t: (n, jnp.minimum((t + 1) * TH, H - 1), 0)),
            pl.BlockSpec((Cin, Cmid), lambda n, t: (0, 0)),
            pl.BlockSpec((1, Cmid), lambda n, t: (0, 0)),
            pl.BlockSpec((4 * Cmid, 4 * Cmid), lambda n, t: (0, 0)),
            pl.BlockSpec((1, 4 * Cmid), lambda n, t: (0, 0)),
            pl.BlockSpec((4 * Cmid, Cout4), lambda n, t: (0, 0)),
            pl.BlockSpec((1, Cout4), lambda n, t: (0, 0)),
        ],
        out_specs=pl.BlockSpec((1, THW, Cout4), lambda n, t: (n, t, 0)),
        compiler_params=pltpu.CompilerParams(
            dimension_semantics=("parallel", "parallel")),
    )(x, x, kp["w1"], kp["b1"], kp["wd"], kp["b2"], kp["w3"], kp["b3"])

    # (N, H*W, 4*Cout) -> NCHW (N, Cout, 2H, 2W).  Column = (py*2+px)*Cout + c.
    # TODO(synk): a channels-last consumer could take `out` directly (the kernel
    # already emits the final lane-dense layout) and skip this transpose.
    y = out.reshape(N, H, W, 2, 2, Cout)
    y = jnp.transpose(y, (0, 5, 1, 3, 2, 4)).reshape(N, Cout, 2 * H, 2 * W)
    return y


# ----------------------------------------------------------------------------
# Parameter construction (PyTorch layouts) and packing for the fused kernel
# ----------------------------------------------------------------------------
def make_torch_like_params(key, in_channels, n_filters):
    Cmid = in_channels // 4
    ks = jax.random.split(key, 18)

    def bn(k0, k1, k2, k3, c):
        return dict(gamma=jax.random.uniform(k0, (c,), jnp.float32, 0.5, 1.5),
                    beta=0.1 * jax.random.normal(k1, (c,), jnp.float32),
                    mean=0.1 * jax.random.normal(k2, (c,), jnp.float32),
                    var=jax.random.uniform(k3, (c,), jnp.float32, 0.5, 1.5))

    return dict(
        w1=0.1 * jax.random.normal(ks[0], (Cmid, in_channels, 1, 1), jnp.float32),
        b1=0.1 * jax.random.normal(ks[1], (Cmid,), jnp.float32),
        bn1=bn(ks[2], ks[3], ks[4], ks[5], Cmid),
        # ConvTranspose2d weight layout: (Cin, Cout, kh, kw)
        wd=0.1 * jax.random.normal(ks[6], (Cmid, Cmid, 3, 3), jnp.float32),
        bd=0.1 * jax.random.normal(ks[7], (Cmid,), jnp.float32),
        bn2=bn(ks[8], ks[9], ks[10], ks[11], Cmid),
        w3=0.1 * jax.random.normal(ks[12], (n_filters, Cmid, 1, 1), jnp.float32),
        b3=0.1 * jax.random.normal(ks[13], (n_filters,), jnp.float32),
        bn3=bn(ks[14], ks[15], ks[16], ks[17], n_filters),
    )


def _fold_bn(bn, conv_bias):
    scale = bn["gamma"] / jnp.sqrt(bn["var"] + _EPS)
    shift = bn["beta"] + (conv_bias - bn["mean"]) * scale
    return scale, shift


def prepare_kernel_params(p):
    """Fold BN (+ conv biases) and pack/scale weights into the fused layouts."""
    Cmid = p["w1"].shape[0]
    Cout = p["w3"].shape[0]

    s1, sh1 = _fold_bn(p["bn1"], p["b1"])
    s2, sh2 = _fold_bn(p["bn2"], p["bd"])
    s3, sh3 = _fold_bn(p["bn3"], p["b3"])

    # conv1 1x1 -> (Cin, Cmid); BN1 scale folded into the columns (exact:
    # per-channel scale commutes with the matmul and precedes the ReLU).
    w1 = p["w1"][:, :, 0, 0].T * s1[None, :]

    # Pack the 9 transposed-conv taps (k=3, stride=2, pad=1, output_pad=1) into
    # one (4*Cmid, 4*Cmid) matrix.  out[2i+py, 2j+px] = sum over contributing
    # shifts (dy,dx) of h[i+dy, j+dx] @ W[:, :, ky, kx] (from oy = 2*iy - 1 + ky).
    T = lambda ky, kx: p["wd"][:, :, ky, kx]        # (Cmid_in, Cmid_out)
    Z = jnp.zeros((Cmid, Cmid), jnp.float32)
    wd_packed = jnp.concatenate([
        jnp.concatenate([T(1, 1), T(1, 2), T(2, 1), T(2, 2)], axis=1),  # (dy,dx)=(0,0)
        jnp.concatenate([Z,       T(1, 0), Z,       T(2, 0)], axis=1),  # (0,1)
        jnp.concatenate([Z,       Z,       T(0, 1), T(0, 2)], axis=1),  # (1,0)
        jnp.concatenate([Z,       Z,       Z,       T(0, 0)], axis=1),  # (1,1)
    ], axis=0)                                      # (4*Cmid, 4*Cmid)
    wd_packed = wd_packed * jnp.tile(s2, 4)[None, :]          # fold BN2 scale

    w3 = p["w3"][:, :, 0, 0].T                                # (Cmid, Cout)
    w3_bd = jnp.kron(jnp.eye(4, dtype=jnp.float32), w3)       # (4*Cmid, 4*Cout)
    w3_bd = w3_bd * jnp.tile(s3, 4)[None, :]                  # fold BN3 scale

    bf16 = jnp.bfloat16
    return dict(
        w1=w1.astype(bf16),
        b1=sh1.reshape(1, Cmid).astype(jnp.float32),
        wd=wd_packed.astype(bf16),
        b2=jnp.tile(sh2, 4).reshape(1, 4 * Cmid).astype(jnp.float32),
        w3=w3_bd.astype(bf16),
        b3=jnp.tile(sh3, 4).reshape(1, 4 * Cout).astype(jnp.float32),
    )


# ----------------------------------------------------------------------------
# Pure-JAX (XLA) reference for numerical validation
# ----------------------------------------------------------------------------
def _bn_eval(y, bn):
    inv = bn["gamma"] / jnp.sqrt(bn["var"] + _EPS)
    return (y - bn["mean"][None, :, None, None]) * inv[None, :, None, None] \
        + bn["beta"][None, :, None, None]


def ref_forward(x, p):
    # conv1 (1x1) + BN + ReLU
    y = jnp.einsum("nchw,oc->nohw", x, p["w1"][:, :, 0, 0]) \
        + p["b1"][None, :, None, None]
    y = jnp.maximum(_bn_eval(y, p["bn1"]), 0.0)
    # ConvTranspose2d(3x3, stride 2, pad 1, output_pad 1) == conv with
    # lhs_dilation=2, padding (1,2), spatially flipped kernel.
    w = jnp.transpose(p["wd"][:, :, ::-1, ::-1], (1, 0, 2, 3))   # (O, I, kh, kw)
    y = jax.lax.conv_general_dilated(
        y, w, window_strides=(1, 1), padding=((1, 2), (1, 2)),
        lhs_dilation=(2, 2), rhs_dilation=(1, 1),
        dimension_numbers=("NCHW", "OIHW", "NCHW"))
    y = y + p["bd"][None, :, None, None]
    y = jnp.maximum(_bn_eval(y, p["bn2"]), 0.0)
    # conv3 (1x1) + BN + ReLU
    y = jnp.einsum("nchw,oc->nohw", y, p["w3"][:, :, 0, 0]) \
        + p["b3"][None, :, None, None]
    y = jnp.maximum(_bn_eval(y, p["bn3"]), 0.0)
    return y


# ----------------------------------------------------------------------------
if __name__ == "__main__":
    N, in_channels, n_filters = 2, 64, 32      # Cmid = 16, Cout = 32
    H = W = 16                                 # output spatial = 32x32

    key = jax.random.PRNGKey(0)
    kx, kparam = jax.random.split(key)
    x = jax.random.normal(kx, (N, in_channels, H, W), jnp.float32)
    torch_params = make_torch_like_params(kparam, in_channels, n_filters)
    kernel_params = prepare_kernel_params(torch_params)

    out = jax.jit(decoder_block_forward)(x, kernel_params)
    out = jax.block_until_ready(out)

    ref = ref_forward(x, torch_params)
    assert out.shape == (N, n_filters, 2 * H, 2 * W), out.shape
    # Tolerance accounts for the bf16 activation/weight feed (f32 MXU accum)
    # vs. the f32 XLA reference; structural bugs give O(0.1+) errors.
    max_err = float(jnp.max(jnp.abs(out - ref)))
    assert jnp.allclose(out, ref, atol=5e-2, rtol=5e-2), max_err
    print("KERNEL_OK")
</pallas_src>

<mosaic_0001>
module attributes {stable_mosaic.version = 11 : i64} {
  func.func @decoder_block_kernel(%arg0: i32, %arg1: i32, %arg2: memref<1x128x64xbf16, #tpu.memory_space<vmem>>, %arg3: memref<1x16x64xbf16, #tpu.memory_space<vmem>>, %arg4: memref<64x16xbf16, #tpu.memory_space<vmem>>, %arg5: memref<1x16xf32, #tpu.memory_space<vmem>>, %arg6: memref<64x64xbf16, #tpu.memory_space<vmem>>, %arg7: memref<1x64xf32, #tpu.memory_space<vmem>>, %arg8: memref<64x128xbf16, #tpu.memory_space<vmem>>, %arg9: memref<1x128xf32, #tpu.memory_space<vmem>>, %arg10: memref<1x128x128xf32, #tpu.memory_space<vmem>>) attributes {dimension_semantics = [#tpu.dimension_semantics<parallel>, #tpu.dimension_semantics<parallel>], iteration_bounds = array<i64: 2, 2>, scalar_prefetch = 0 : i64, scratch_operands = 0 : i64, tpu.core_type = #tpu.core_type<tc>, window_params = [{transform_indices = @transform_0, window_bounds = array<i64: 1, 128, 64>}, {transform_indices = @transform_1, window_bounds = array<i64: 1, 16, 64>}, {pipeline_mode = #tpu.pipeline_mode<synchronous>, transform_indices = @transform_2, window_bounds = array<i64: 64, 16>}, {pipeline_mode = #tpu.pipeline_mode<synchronous>, transform_indices = @transform_3, window_bounds = array<i64: 1, 16>}, {pipeline_mode = #tpu.pipeline_mode<synchronous>, transform_indices = @transform_4, window_bounds = array<i64: 64, 64>}, {pipeline_mode = #tpu.pipeline_mode<synchronous>, transform_indices = @transform_5, window_bounds = array<i64: 1, 64>}, {pipeline_mode = #tpu.pipeline_mode<synchronous>, transform_indices = @transform_6, window_bounds = array<i64: 64, 128>}, {pipeline_mode = #tpu.pipeline_mode<synchronous>, transform_indices = @transform_7, window_bounds = array<i64: 1, 128>}, {transform_indices = @transform_8, window_bounds = array<i64: 1, 128, 128>}]} {
    %c1_i32 = arith.constant 1 : i32
    %0 = arith.cmpi eq, %arg1, %c1_i32 : i32
    %c0 = arith.constant 0 : index
    %c0_0 = arith.constant 0 : index
    %c0_1 = arith.constant 0 : index
    %1 = vector.load %arg2[%c0, %c0_0, %c0_1] : memref<1x128x64xbf16, #tpu.memory_space<vmem>>, vector<1x128x64xbf16>
    %2 = vector.shape_cast %1 : vector<1x128x64xbf16> to vector<128x64xbf16>
    %c0_2 = arith.constant 0 : index
    %c0_3 = arith.constant 0 : index
    %c0_4 = arith.constant 0 : index
    %3 = vector.load %arg3[%c0_2, %c0_3, %c0_4] : memref<1x16x64xbf16, #tpu.memory_space<vmem>>, vector<1x16x64xbf16>
    %4 = vector.shape_cast %3 : vector<1x16x64xbf16> to vector<16x64xbf16>
    %5 = tpu.concatenate %2, %4 in 0 : vector<128x64xbf16>, vector<16x64xbf16> -> vector<144x64xbf16>
    %c0_5 = arith.constant 0 : index
    %c0_6 = arith.constant 0 : index
    %6 = vector.load %arg4[%c0_5, %c0_6] : memref<64x16xbf16, #tpu.memory_space<vmem>>, vector<64x16xbf16>
    %cst = arith.constant dense<0.000000e+00> : vector<144x16xf32>
    %7 = tpu.matmul %5, %6, %cst {dimension_numbers = #tpu.dot_dimension_numbers<[1], [0], [0], [1], [0, 0, 1, 1], [], []>} : vector<144x64xbf16>, vector<64x16xbf16>, vector<144x16xf32> -> vector<144x16xf32>
    %c0_7 = arith.constant 0 : index
    %c0_8 = arith.constant 0 : index
    %8 = vector.load %arg5[%c0_7, %c0_8] : memref<1x16xf32, #tpu.memory_space<vmem>>, vector<1x16xf32>
    %9 = vector.broadcast %8 : vector<1x16xf32> to vector<144x16xf32>
    %10 = arith.addf %7, %9 : vector<144x16xf32>
    %cst_9 = arith.constant 0.000000e+00 : f32
    %11 = vector.broadcast %cst_9 : f32 to vector<144x16xf32>
    %12 = arith.maximumf %10, %11 : vector<144x16xf32>
    %13 = tpu.iota {dimensions = array<i32: 0>} : vector<144x1xi32>
    %c128_i32 = arith.constant 128 : i32
    %14 = vector.broadcast %c128_i32 : i32 to vector<144x1xi32>
    %15 = arith.cmpi sge, %13, %14 : vector<144x1xi32>
    %16 = vector.broadcast %0 : i1 to vector<144x1xi1>
    %17 = arith.andi %15, %16 : vector<144x1xi1>
    %cst_10 = arith.constant 0.000000e+00 : f32
    %18 = vector.shape_cast %17 : vector<144x1xi1> to vector<144x1xi1>
    %19 = vector.broadcast %18 : vector<144x1xi1> to vector<144x16xi1>
    %20 = vector.broadcast %cst_10 : f32 to vector<144x16xf32>
    %21 = arith.select %19, %20, %12 : vector<144x16xi1>, vector<144x16xf32>
    %cst_11 = arith.constant 0.000000e+00 : f32
    %22 = vector.broadcast %cst_11 : f32 to vector<16x16xf32>
    %23 = tpu.concatenate %21, %22 in 0 : vector<144x16xf32>, vector<16x16xf32> -> vector<160x16xf32>
    %24 = tpu.iota {dimensions = array<i32: 0>} : vector<128x1xi32>
    %c16_i32 = arith.constant 16 : i32
    %c0_i32 = arith.constant 0 : i32
    %25 = arith.cmpi eq, %c16_i32, %c0_i32 : i32
    %c1_i32_12 = arith.constant 1 : i32
    %26 = arith.select %25, %c1_i32_12, %c16_i32 : i32
    %27 = vector.broadcast %26 : i32 to vector<128x1xi32>
    %28 = arith.remsi %24, %27 : vector<128x1xi32>
    %c0_i32_13 = arith.constant 0 : i32
    %29 = vector.broadcast %c0_i32_13 : i32 to vector<128x1xi32>
    %30 = arith.cmpi ne, %28, %29 : vector<128x1xi32>
    %c0_i32_14 = arith.constant 0 : i32
    %31 = vector.broadcast %c0_i32_14 : i32 to vector<128x1xi32>
    %32 = arith.cmpi slt, %28, %31 : vector<128x1xi32>
    %c0_i32_15 = arith.constant 0 : i32
    %33 = arith.cmpi slt, %26, %c0_i32_15 : i32
    %34 = vector.broadcast %33 : i1 to vector<128x1xi1>
    %35 = vector.broadcast %34 : vector<128x1xi1> to vector<128x1xi1>
    %36 = arith.xori %32, %35 : vector<128x1xi1>
    %37 = arith.andi %36, %30 : vector<128x1xi1>
    %38 = vector.broadcast %26 : i32 to vector<128x1xi32>
    %39 = arith.addi %28, %38 : vector<128x1xi32>
    %40 = arith.select %37, %39, %28 : vector<128x1xi1>, vector<128x1xi32>
    %c15_i32 = arith.constant 15 : i32
    %41 = vector.broadcast %c15_i32 : i32 to vector<128x1xi32>
    %42 = arith.cmpi ne, %40, %41 : vector<128x1xi32>
    %43 = vector.extract_strided_slice %23 {offsets = [0, 0], sizes = [128, 16], strides = [1, 1]} : vector<160x16xf32> to vector<128x16xf32>
    %44 = vector.extract_strided_slice %23 {offsets = [1, 0], sizes = [128, 16], strides = [1, 1]} : vector<160x16xf32> to vector<128x16xf32>
    %cst_16 = arith.constant 0.000000e+00 : f32
    %45 = vector.shape_cast %42 : vector<128x1xi1> to vector<128x1xi1>
    %46 = vector.broadcast %45 : vector<128x1xi1> to vector<128x16xi1>
    %47 = vector.broadcast %cst_16 : f32 to vector<128x16xf32>
    %48 = arith.select %46, %44, %47 : vector<128x16xi1>, vector<128x16xf32>
    %49 = vector.extract_strided_slice %23 {offsets = [16, 0], sizes = [128, 16], strides = [1, 1]} : vector<160x16xf32> to vector<128x16xf32>
    %50 = vector.extract_strided_slice %23 {offsets = [17, 0], sizes = [128, 16], strides = [1, 1]} : vector<160x16xf32> to vector<128x16xf32>
    %cst_17 = arith.constant 0.000000e+00 : f32
    %51 = vector.shape_cast %42 : vector<128x1xi1> to vector<128x1xi1>
    %52 = vector.broadcast %51 : vector<128x1xi1> to vector<128x16xi1>
    %53 = vector.broadcast %cst_17 : f32 to vector<128x16xf32>
    %54 = arith.select %52, %50, %53 : vector<128x16xi1>, vector<128x16xf32>
    %55 = arith.truncf %43 : vector<128x16xf32> to vector<128x16xbf16>
    %c0_18 = arith.constant 0 : index
    %c0_19 = arith.constant 0 : index
    %56 = vector.load %arg6[%c0_18, %c0_19] : memref<64x64xbf16, #tpu.memory_space<vmem>>, vector<16x64xbf16>
    %cst_20 = arith.constant dense<0.000000e+00> : vector<128x64xf32>
    %57 = tpu.matmul %55, %56, %cst_20 {dimension_numbers = #tpu.dot_dimension_numbers<[1], [0], [0], [1], [0, 0, 1, 1], [], []>} : vector<128x16xbf16>, vector<16x64xbf16>, vector<128x64xf32> -> vector<128x64xf32>
    %58 = arith.truncf %48 : vector<128x16xf32> to vector<128x16xbf16>
    %c16 = arith.constant 16 : index
    %c0_21 = arith.constant 0 : index
    %59 = vector.load %arg6[%c16, %c0_21] : memref<64x64xbf16, #tpu.memory_space<vmem>>, vector<16x64xbf16>
    %cst_22 = arith.constant dense<0.000000e+00> : vector<128x64xf32>
    %60 = tpu.matmul %58, %59, %cst_22 {dimension_numbers = #tpu.dot_dimension_numbers<[1], [0], [0], [1], [0, 0, 1, 1], [], []>} : vector<128x16xbf16>, vector<16x64xbf16>, vector<128x64xf32> -> vector<128x64xf32>
    %61 = arith.addf %57, %60 : vector<128x64xf32>
    %62 = arith.truncf %49 : vector<128x16xf32> to vector<128x16xbf16>
    %c32 = arith.constant 32 : index
    %c0_23 = arith.constant 0 : index
    %63 = vector.load %arg6[%c32, %c0_23] : memref<64x64xbf16, #tpu.memory_space<vmem>>, vector<16x64xbf16>
    %cst_24 = arith.constant dense<0.000000e+00> : vector<128x64xf32>
    %64 = tpu.matmul %62, %63, %cst_24 {dimension_numbers = #tpu.dot_dimension_numbers<[1], [0], [0], [1], [0, 0, 1, 1], [], []>} : vector<128x16xbf16>, vector<16x64xbf16>, vector<128x64xf32> -> vector<128x64xf32>
    %65 = arith.addf %61, %64 : vector<128x64xf32>
    %66 = arith.truncf %54 : vector<128x16xf32> to vector<128x16xbf16>
    %c48 = arith.constant 48 : index
    %c0_25 = arith.constant 0 : index
    %67 = vector.load %arg6[%c48, %c0_25] : memref<64x64xbf16, #tpu.memory_space<vmem>>, vector<16x64xbf16>
    %cst_26 = arith.constant dense<0.000000e+00> : vector<128x64xf32>
    %68 = tpu.matmul %66, %67, %cst_26 {dimension_numbers = #tpu.dot_dimension_numbers<[1], [0], [0], [1], [0, 0, 1, 1], [], []>} : vector<128x16xbf16>, vector<16x64xbf16>, vector<128x64xf32> -> vector<128x64xf32>
    %69 = arith.addf %65, %68 : vector<128x64xf32>
    %c0_27 = arith.constant 0 : index
    %c0_28 = arith.constant 0 : index
    %70 = vector.load %arg7[%c0_27, %c0_28] : memref<1x64xf32, #tpu.memory_space<vmem>>, vector<1x64xf32>
    %71 = vector.broadcast %70 : vector<1x64xf32> to vector<128x64xf32>
    %72 = arith.addf %69, %71 : vector<128x64xf32>
    %cst_29 = arith.constant 0.000000e+00 : f32
    %73 = vector.broadcast %cst_29 : f32 to vector<128x64xf32>
    %74 = arith.maximumf %72, %73 : vector<128x64xf32>
    %75 = arith.truncf %74 : vector<128x64xf32> to vector<128x64xbf16>
    %c0_30 = arith.constant 0 : index
    %c0_31 = arith.constant 0 : index
    %76 = vector.load %arg8[%c0_30, %c0_31] : memref<64x128xbf16, #tpu.memory_space<vmem>>, vector<64x128xbf16>
    %cst_32 = arith.constant dense<0.000000e+00> : vector<128x128xf32>
    %77 = tpu.matmul %75, %76, %cst_32 {dimension_numbers = #tpu.dot_dimension_numbers<[1], [0], [0], [1], [0, 0, 1, 1], [], []>} : vector<128x64xbf16>, vector<64x128xbf16>, vector<128x128xf32> -> vector<128x128xf32>
    %c0_33 = arith.constant 0 : index
    %c0_34 = arith.constant 0 : index
    %78 = vector.load %arg9[%c0_33, %c0_34] : memref<1x128xf32, #tpu.memory_space<vmem>>, vector<1x128xf32>
    %79 = vector.broadcast %78 : vector<1x128xf32> to vector<128x128xf32>
    %80 = arith.addf %77, %79 : vector<128x128xf32>
    %cst_35 = arith.constant 0.000000e+00 : f32
    %81 = vector.broadcast %cst_35 : f32 to vector<128x128xf32>
    %82 = arith.maximumf %80, %81 : vector<128x128xf32>
    %c0_36 = arith.constant 0 : index
    %c0_37 = arith.constant 0 : index
    %c0_38 = arith.constant 0 : index
    %83 = vector.load %arg10[%c0_36, %c0_37, %c0_38] : memref<1x128x128xf32, #tpu.memory_space<vmem>>, vector<1x128x128xf32>
    %84 = vector.shape_cast %83 : vector<1x128x128xf32> to vector<128x128xf32>
    %85 = vector.shape_cast %82 : vector<128x128xf32> to vector<1x128x128xf32>
    tpu.vector_store %arg10[%c0_36, %c0_37, %c0_38], %85 {strides = array<i32>} : memref<1x128x128xf32, #tpu.memory_space<vmem>>, vector<1x128x128xf32>,
    return
  }
  func.func @transform_0(%arg0: i32, %arg1: i32) -> (i32, i32, i32) {
    %c0_i32 = arith.constant 0 : i32
    %c0_i32_0 = arith.constant 0 : i32
    return %arg0, %arg1, %c0_i32 : i32, i32, i32
  }
  func.func @transform_1(%arg0: i32, %arg1: i32) -> (i32, i32, i32) {
    %c1_i32 = arith.constant 1 : i32
    %0 = arith.addi %arg1, %c1_i32 : i32
    %c8_i32 = arith.constant 8 : i32
    %1 = arith.muli %0, %c8_i32 : i32
    %c15_i32 = arith.constant 15 : i32
    %2 = arith.minsi %1, %c15_i32 : i32
    %c0_i32 = arith.constant 0 : i32
    %c0_i32_0 = arith.constant 0 : i32
    return %arg0, %2, %c0_i32 : i32, i32, i32
  }
  func.func @transform_2(%arg0: i32, %arg1: i32) -> (i32, i32) {
    %c0_i32 = arith.constant 0 : i32
    %c0_i32_0 = arith.constant 0 : i32
    %c0_i32_1 = arith.constant 0 : i32
    return %c0_i32, %c0_i32_0 : i32, i32
  }
  func.func @transform_3(%arg0: i32, %arg1: i32) -> (i32, i32) {
    %c0_i32 = arith.constant 0 : i32
    %c0_i32_0 = arith.constant 0 : i32
    %c0_i32_1 = arith.constant 0 : i32
    return %c0_i32, %c0_i32_0 : i32, i32
  }
  func.func @transform_4(%arg0: i32, %arg1: i32) -> (i32, i32) {
    %c0_i32 = arith.constant 0 : i32
    %c0_i32_0 = arith.constant 0 : i32
    %c0_i32_1 = arith.constant 0 : i32
    return %c0_i32, %c0_i32_0 : i32, i32
  }
  func.func @transform_5(%arg0: i32, %arg1: i32) -> (i32, i32) {
    %c0_i32 = arith.constant 0 : i32
    %c0_i32_0 = arith.constant 0 : i32
    %c0_i32_1 = arith.constant 0 : i32
    return %c0_i32, %c0_i32_0 : i32, i32
  }
  func.func @transform_6(%arg0: i32, %arg1: i32) -> (i32, i32) {
    %c0_i32 = arith.constant 0 : i32
    %c0_i32_0 = arith.constant 0 : i32
    %c0_i32_1 = arith.constant 0 : i32
    return %c0_i32, %c0_i32_0 : i32, i32
  }
  func.func @transform_7(%arg0: i32, %arg1: i32) -> (i32, i32) {
    %c0_i32 = arith.constant 0 : i32
    %c0_i32_0 = arith.constant 0 : i32
    %c0_i32_1 = arith.constant 0 : i32
    return %c0_i32, %c0_i32_0 : i32, i32
  }
  func.func @transform_8(%arg0: i32, %arg1: i32) -> (i32, i32, i32) {
    %c0_i32 = arith.constant 0 : i32
    %c0_i32_0 = arith.constant 0 : i32
    return %arg0, %arg1, %c0_i32 : i32, i32, i32
  }
}

</mosaic_0001>

<llo_original>
// kernel: decoder_block_forward.1
$region0: #{decoder_block_forward.1}
  #allocation0 [shape = 'u32[]', space=smem, size = 0x4, offset = 0x4, fixed_abs, tag = 'smem constant byte address 0x4 - core index']
  #allocation1 [shape = 'u32[144,128]{1,0:T(1,128)}', space=vmem, size = 0x12000, scoped, tag = 'internal scratch']
  %s0 = inlined_call_operand.vmem [shape: bf16[2,256,64], index: 0, kind: input, shape index: {}, may-alias: {0,1}]
  %s1 = inlined_call_operand.vmem [shape: bf16[2,256,64], index: 1, kind: input, shape index: {}, may-alias: {0,1}]
  %s2 = inlined_call_operand.vmem [shape: bf16[64,16], index: 2, kind: input, shape index: {}]
  %s3 = inlined_call_operand.vmem [shape: f32[1,16], index: 3, kind: input, shape index: {}]
  %s4 = inlined_call_operand.vmem [shape: bf16[64,64], index: 4, kind: input, shape index: {}]
  %s5 = inlined_call_operand.vmem [shape: f32[1,64], index: 5, kind: input, shape index: {}]
  %s6 = inlined_call_operand.vmem [shape: bf16[64,128], index: 6, kind: input, shape index: {}]
  %s7 = inlined_call_operand.vmem [shape: f32[1,128], index: 7, kind: input, shape index: {}]
  %s8 = inlined_call_operand.vmem [shape: f32[2,256,128], index: 8, kind: output, shape index: {}]
  %s9 = sld [smem:[#allocation0]]
  $region65: #{decoder_block_forward.1} parent=0
    _
  %s11 = ssub.s32 1, %s9
  %s12 = scalar_select 0, %s11, %s9
  loop: start=0, step=1, limit=6
  $region2: #{decoder_block_forward.1} parent=0 // loop_pre_header
    _
  $region3: #{decoder_block_forward.1} parent=0 // loop_header
    %s14 = sphi 0, %s18
    %p15 = scmp.ge.s32.totalorder %s14, 6
    %s21 = sphi 0, %s33
    %s22 = sphi 0, %s29
    %s23 = sphi 0, %s21
    %s24 = sphi 0, %s22
    %s25 = sphi 0, %s23
    %s26 = sphi 0, %s24
    %s38 = sphi 0, %s40
    %s41 = sphi 0, %s38
    %s42 = sphi 0, %s41
    %s58 = sphi 0, %s42
    %s74 = sphi 0, %s76
    %s77 = sphi 0, %s74
    %s78 = sphi 0, %s77
    %s94 = sphi 0, %s78
    %s98 = sphi 0, %s98
    %s100 = sphi 0, %s98
    %s101 = sphi 0, %s100
    %s115 = sphi 0, %s101
    %s119 = sphi 0, %s119
    %s121 = sphi 0, %s119
    %s122 = sphi 0, %s121
    %s136 = sphi 0, %s122
    %s140 = sphi 0, %s140
    %s142 = sphi 0, %s140
    %s143 = sphi 0, %s142
    %s157 = sphi 0, %s143
    %s161 = sphi 0, %s161
    %s163 = sphi 0, %s161
    %s164 = sphi 0, %s163
    %s178 = sphi 0, %s164
    %s182 = sphi 0, %s182
    %s184 = sphi 0, %s182
    %s185 = sphi 0, %s184
    %s199 = sphi 0, %s185
    %s203 = sphi 0, %s203
    %s205 = sphi 0, %s203
    %s206 = sphi 0, %s205
    %s220 = sphi 0, %s206
    %s228 = sphi 0, %s230
    %s231 = sphi 0, %s228
    %s232 = sphi 0, %s231
    %s248 = sphi 0, %s232
  $region4: #{decoder_block_forward.1} parent=0 // loop_header_branch
    %17 = sbr.rel (%p15) target = $region8
  $region5: #{decoder_block_forward.1} parent=0 // loop_body
    %s19 = ssub.s32 %s14, 1
    %s20 = ssub.s32 %s14, 2
    %s27 = sadd.s32 1, %s22
    %p28 = scmp.ge.s32.totalorder %s27, 2
    %s29 = scalar_select %p28, 0, %s27
    %s30 = sadd.s32 1, %s21
    %s31 = scalar_select %p28, %s30, %s21
    %p32 = scmp.ge.s32.totalorder %s31, 2
    %s33 = scalar_select %p32, 0, %s31
    %s34 = ssub.s32 %s21, %s33
    %s35 = ssub.s32 %s22, %s29
    %s36 = sor.u32 %s34, %s35
    %p37 = scmp.eq.s32.totalorder %s36, 0
    %s39 = sadd.s32 %s38, 1
    %s40 = scalar_select %p37, %s38, %s39
    %p43 = pneg %p37
    %p44 = scmp.eq.s32.totalorder %s14, 3
    %p45 = por %p43, %p44
    %p46 = scmp.ne.s32.totalorder %s38, %s41
    %p47 = scmp.eq.s32.totalorder %s14, 0
    %p48 = por %p46, %p47
    %p49 = scmp.ne.s32.totalorder %s38, %s41
    %p50 = scmp.eq.s32.totalorder %s19, 3
    %p51 = por %p49, %p50
    %p52 = scmp.ne.s32.totalorder %s41, %s42
    %p53 = scmp.eq.s32.totalorder %s19, 0
    %p54 = por %p52, %p53
    %p55 = scmp.ne.s32.totalorder %s41, %s42
    %p56 = scmp.eq.s32.totalorder %s20, 3
    %p57 = por %p55, %p56
    %p59 = scmp.ne.s32.totalorder %s42, %s58
    %p60 = scmp.eq.s32.totalorder %s20, 0
    %p61 = por %p59, %p60
    %s62 = sadd.s32 %s22, 1
    %s63 = smul.u32 %s62, 8
    %p64 = scmp.lt.s32.totalorder %s63, 15
    %s65 = scalar_select %p64, %s63, 15
    %s66 = sadd.s32 %s29, 1
    %s67 = smul.u32 %s66, 8
    %p68 = scmp.lt.s32.totalorder %s67, 15
    %s69 = scalar_select %p68, %s67, 15
    %s70 = ssub.s32 %s21, %s33
    %s71 = ssub.s32 %s65, %s69
    %s72 = sor.u32 %s70, %s71
    %p73 = scmp.eq.s32.totalorder %s72, 0
    %s75 = sadd.s32 %s74, 1
    %s76 = scalar_select %p73, %s74, %s75
    %p79 = pneg %p73
    %p80 = scmp.eq.s32.totalorder %s14, 3
    %p81 = por %p79, %p80
    %p82 = scmp.ne.s32.totalorder %s74, %s77
    %p83 = scmp.eq.s32.totalorder %s14, 0
    %p84 = por %p82, %p83
    %p85 = scmp.ne.s32.totalorder %s74, %s77
    %p86 = scmp.eq.s32.totalorder %s19, 3
    %p87 = por %p85, %p86
    %p88 = scmp.ne.s32.totalorder %s77, %s78
    %p89 = scmp.eq.s32.totalorder %s19, 0
    %p90 = por %p88, %p89
    %p91 = scmp.ne.s32.totalorder %s77, %s78
    %p92 = scmp.eq.s32.totalorder %s20, 3
    %p93 = por %p91, %p92
    %p95 = scmp.ne.s32.totalorder %s78, %s94
    %p96 = scmp.eq.s32.totalorder %s20, 0
    %p97 = por %p95, %p96
    %s99 = sadd.s32 %s98, 1
    %p102 = scmp.eq.s32.totalorder %s14, 3
    %p103 = scmp.ne.s32.totalorder %s98, %s100
    %p104 = scmp.eq.s32.totalorder %s14, 0
    %p105 = por %p103, %p104
    %p106 = scmp.ne.s32.totalorder %s98, %s100
    %p107 = scmp.eq.s32.totalorder %s19, 3
    %p108 = por %p106, %p107
    %p109 = scmp.ne.s32.totalorder %s100, %s101
    %p110 = scmp.eq.s32.totalorder %s19, 0
    %p111 = por %p109, %p110
    %p112 = scmp.ne.s32.totalorder %s100, %s101
    %p113 = scmp.eq.s32.totalorder %s20, 3
    %p114 = por %p112, %p113
    %p116 = scmp.ne.s32.totalorder %s101, %s115
    %p117 = scmp.eq.s32.totalorder %s20, 0
    %p118 = por %p116, %p117
    %s120 = sadd.s32 %s119, 1
    %p123 = scmp.eq.s32.totalorder %s14, 3
    %p124 = scmp.ne.s32.totalorder %s119, %s121
    %p125 = scmp.eq.s32.totalorder %s14, 0
    %p126 = por %p124, %p125
    %p127 = scmp.ne.s32.totalorder %s119, %s121
    %p128 = scmp.eq.s32.totalorder %s19, 3
    %p129 = por %p127, %p128
    %p130 = scmp.ne.s32.totalorder %s121, %s122
    %p131 = scmp.eq.s32.totalorder %s19, 0
    %p132 = por %p130, %p131
    %p133 = scmp.ne.s32.totalorder %s121, %s122
    %p134 = scmp.eq.s32.totalorder %s20, 3
    %p135 = por %p133, %p134
    %p137 = scmp.ne.s32.totalorder %s122, %s136
    %p138 = scmp.eq.s32.totalorder %s20, 0
    %p139 = por %p137, %p138
    %s141 = sadd.s32 %s140, 1
    %p144 = scmp.eq.s32.totalorder %s14, 3
    %p145 = scmp.ne.s32.totalorder %s140, %s142
    %p146 = scmp.eq.s32.totalorder %s14, 0
    %p147 = por %p145, %p146
    %p148 = scmp.ne.s32.totalorder %s140, %s142
    %p149 = scmp.eq.s32.totalorder %s19, 3
    %p150 = por %p148, %p149
    %p151 = scmp.ne.s32.totalorder %s142, %s143
    %p152 = scmp.eq.s32.totalorder %s19, 0
    %p153 = por %p151, %p152
    %p154 = scmp.ne.s32.totalorder %s142, %s143
    %p155 = scmp.eq.s32.totalorder %s20, 3
    %p156 = por %p154, %p155
    %p158 = scmp.ne.s32.totalorder %s143, %s157
    %p159 = scmp.eq.s32.totalorder %s20, 0
    %p160 = por %p158, %p159
    %s162 = sadd.s32 %s161, 1
    %p165 = scmp.eq.s32.totalorder %s14, 3
    %p166 = scmp.ne.s32.totalorder %s161, %s163
    %p167 = scmp.eq.s32.totalorder %s14, 0
    %p168 = por %p166, %p167
    %p169 = scmp.ne.s32.totalorder %s161, %s163
    %p170 = scmp.eq.s32.totalorder %s19, 3
    %p171 = por %p169, %p170
    %p172 = scmp.ne.s32.totalorder %s163, %s164
    %p173 = scmp.eq.s32.totalorder %s19, 0
    %p174 = por %p172, %p173
    %p175 = scmp.ne.s32.totalorder %s163, %s164
    %p176 = scmp.eq.s32.totalorder %s20, 3
    %p177 = por %p175, %p176
    %p179 = scmp.ne.s32.totalorder %s164, %s178
    %p180 = scmp.eq.s32.totalorder %s20, 0
    %p181 = por %p179, %p180
    %s183 = sadd.s32 %s182, 1
    %p186 = scmp.eq.s32.totalorder %s14, 3
    %p187 = scmp.ne.s32.totalorder %s182, %s184
    %p188 = scmp.eq.s32.totalorder %s14, 0
    %p189 = por %p187, %p188
    %p190 = scmp.ne.s32.totalorder %s182, %s184
    %p191 = scmp.eq.s32.totalorder %s19, 3
    %p192 = por %p190, %p191
    %p193 = scmp.ne.s32.totalorder %s184, %s185
    %p194 = scmp.eq.s32.totalorder %s19, 0
    %p195 = por %p193, %p194
    %p196 = scmp.ne.s32.totalorder %s184, %s185
    %p197 = scmp.eq.s32.totalorder %s20, 3
    %p198 = por %p196, %p197
    %p200 = scmp.ne.s32.totalorder %s185, %s199
    %p201 = scmp.eq.s32.totalorder %s20, 0
    %p202 = por %p200, %p201
    %s204 = sadd.s32 %s203, 1
    %p207 = scmp.eq.s32.totalorder %s14, 3
    %p208 = scmp.ne.s32.totalorder %s203, %s205
    %p209 = scmp.eq.s32.totalorder %s14, 0
    %p210 = por %p208, %p209
    %p211 = scmp.ne.s32.totalorder %s203, %s205
    %p212 = scmp.eq.s32.totalorder %s19, 3
    %p213 = por %p211, %p212
    %p214 = scmp.ne.s32.totalorder %s205, %s206
    %p215 = scmp.eq.s32.totalorder %s19, 0
    %p216 = por %p214, %p215
    %p217 = scmp.ne.s32.totalorder %s205, %s206
    %p218 = scmp.eq.s32.totalorder %s20, 3
    %p219 = por %p217, %p218
    %p221 = scmp.ne.s32.totalorder %s206, %s220
    %p222 = scmp.eq.s32.totalorder %s20, 0
    %p223 = por %p221, %p222
    %s224 = ssub.s32 %s21, %s33
    %s225 = ssub.s32 %s22, %s29
    %s226 = sor.u32 %s224, %s225
    %p227 = scmp.eq.s32.totalorder %s226, 0
    %s229 = sadd.s32 %s228, 1
    %s230 = scalar_select %p227, %s228, %s229
    %p233 = pneg %p227
    %p234 = scmp.eq.s32.totalorder %s14, 3
    %p235 = por %p233, %p234
    %p236 = scmp.ne.s32.totalorder %s228, %s231
    %p237 = scmp.eq.s32.totalorder %s14, 0
    %p238 = por %p236, %p237
    %p239 = scmp.ne.s32.totalorder %s228, %s231
    %p240 = scmp.eq.s32.totalorder %s19, 3
    %p241 = por %p239, %p240
    %p242 = scmp.ne.s32.totalorder %s231, %s232
    %p243 = scmp.eq.s32.totalorder %s19, 0
    %p244 = por %p242, %p243
    %p245 = scmp.ne.s32.totalorder %s231, %s232
    %p246 = scmp.eq.s32.totalorder %s20, 3
    %p247 = por %p245, %p246
    %p249 = scmp.ne.s32.totalorder %s232, %s248
    %p250 = scmp.eq.s32.totalorder %s20, 0
    %p251 = por %p249, %p250
    %p252 = scmp.le.s32.totalorder 1, %s14
    %p253 = scmp.lt.s32.totalorder %s14, 5
    %p254 = pnand %p252, %p253
    %p255 = pneg %p254
    // Predicated region
    $region9: #{decoder_block_forward.1} parent=5 // pred_check
      _
    $region10: #{decoder_block_forward.1} parent=5 // pred_check_branch
      %257 = sbr.rel (%p254) target = $region12
    $region11: #{decoder_block_forward.1} parent=5 // pred_region
      %s258 = ssub.s32 %s14, 1
      // Predicated region
      $region13: #{decoder_block_forward.1} parent=11 // pred_check
        %p259 = pneg %p111
      $region14: #{decoder_block_forward.1} parent=11 // pred_check_branch
        %261 = sbr.rel (%p259) target = $region16
      $region15: #{decoder_block_forward.1} parent=11 // pred_region
        _
      $region16: #{decoder_block_forward.1} parent=11 // pred_fallthru
        _
      // Predicated region
      $region17: #{decoder_block_forward.1} parent=11 // pred_check
        %p262 = pneg %p132
      $region18: #{decoder_block_forward.1} parent=11 // pred_check_branch
        %264 = sbr.rel (%p262) target = $region20
      $region19: #{decoder_block_forward.1} parent=11 // pred_region
        _
      $region20: #{decoder_block_forward.1} parent=11 // pred_fallthru
        _
      // Predicated region
      $region21: #{decoder_block_forward.1} parent=11 // pred_check
        %p265 = pneg %p153
      $region22: #{decoder_block_forward.1} parent=11 // pred_check_branch
        %267 = sbr.rel (%p265) target = $region24
      $region23: #{decoder_block_forward.1} parent=11 // pred_region
        _
      $region24: #{decoder_block_forward.1} parent=11 // pred_fallthru
        _
      // Predicated region
      $region25: #{decoder_block_forward.1} parent=11 // pred_check
        %p268 = pneg %p174
      $region26: #{decoder_block_forward.1} parent=11 // pred_check_branch
        %270 = sbr.rel (%p268) target = $region28
      $region27: #{decoder_block_forward.1} parent=11 // pred_region
        _
      $region28: #{decoder_block_forward.1} parent=11 // pred_fallthru
        _
      // Predicated region
      $region29: #{decoder_block_forward.1} parent=11 // pred_check
        %p271 = pneg %p195
      $region30: #{decoder_block_forward.1} parent=11 // pred_check_branch
        %273 = sbr.rel (%p271) target = $region32
      $region31: #{decoder_block_forward.1} parent=11 // pred_region
        _
      $region32: #{decoder_block_forward.1} parent=11 // pred_fallthru
        _
      // Predicated region
      $region33: #{decoder_block_forward.1} parent=11 // pred_check
        %p274 = pneg %p216
      $region34: #{decoder_block_forward.1} parent=11 // pred_check_branch
        %276 = sbr.rel (%p274) target = $region36
      $region35: #{decoder_block_forward.1} parent=11 // pred_region
        _
      $region36: #{decoder_block_forward.1} parent=11 // pred_fallthru
        _
    $region12: #{decoder_block_forward.1} parent=5 // pred_fallthru
      _
    %p277 = scmp.lt.s32.totalorder %s14, 4
    // Predicated region
    $region37: #{decoder_block_forward.1} parent=5 // pred_check
      %p278 = pneg %p277
    $region38: #{decoder_block_forward.1} parent=5 // pred_check_branch
      %280 = sbr.rel (%p278) target = $region40
    $region39: #{decoder_block_forward.1} parent=5 // pred_region
      // Predicated region
      $region41: #{decoder_block_forward.1} parent=39 // pred_check
        %p281 = pneg %p48
      $region42: #{decoder_block_forward.1} parent=39 // pred_check_branch
        %283 = sbr.rel (%p281) target = $region44
      $region43: #{decoder_block_forward.1} parent=39 // pred_region
        %s284 = smul.u32 16, %s22
        %p285 = scmp.lt.s32.totalorder %s21, 1
        %s286 = scalar_select %p285, %s21, 1
        %p287 = scmp.lt.s32.totalorder %s284, 31
        %s288 = scalar_select %p287, %s284, 31
        %s289 = smul.addr %s286, 32
        %s290 = sadd.s32 %s288, %s289
        %s291 = smul.addr %s290, 4
        %s292 = scalar_lea.vmem %s0, %s291
        %s293 = smul.u32 16, %s22
      $region44: #{decoder_block_forward.1} parent=39 // pred_fallthru
        _
      // Predicated region
      $region45: #{decoder_block_forward.1} parent=39 // pred_check
        %p294 = pneg %p84
      $region46: #{decoder_block_forward.1} parent=39 // pred_check_branch
        %296 = sbr.rel (%p294) target = $region48
      $region47: #{decoder_block_forward.1} parent=39 // pred_region
        %s297 = sadd.s32 %s22, 1
        %s298 = smul.u32 %s297, 8
        %p299 = scmp.lt.s32.totalorder %s298, 15
        %s300 = scalar_select %p299, %s298, 15
        %s301 = smul.u32 2, %s300
        %p302 = scmp.lt.s32.totalorder %s21, 1
        %s303 = scalar_select %p302, %s21, 1
        %p304 = scmp.lt.s32.totalorder %s301, 31
        %s305 = scalar_select %p304, %s301, 31
        %s306 = smul.addr %s303, 32
        %s307 = sadd.s32 %s305, %s306
        %s308 = smul.addr %s307, 4
        %s309 = scalar_lea.vmem %s1, %s308
        %s310 = sadd.s32 %s22, 1
        %s311 = smul.u32 %s310, 8
        %p312 = scmp.lt.s32.totalorder %s311, 15
        %s313 = scalar_select %p312, %s311, 15
        %s314 = smul.u32 2, %s313
      $region48: #{decoder_block_forward.1} parent=39 // pred_fallthru
        _
    $region40: #{decoder_block_forward.1} parent=5 // pred_fallthru
      _
    %p315 = scmp.le.s32.totalorder 1, %s14
    %p316 = scmp.lt.s32.totalorder %s14, 5
    %p317 = pnand %p315, %p316
    %p318 = pneg %p317
    // Predicated region
    $region49: #{decoder_block_forward.1} parent=5 // pred_check
      _
    $region50: #{decoder_block_forward.1} parent=5 // pred_check_branch
      %320 = sbr.rel (%p317) target = $region52
    $region51: #{decoder_block_forward.1} parent=5 // pred_region
      %s321 = ssub.s32 %s14, 1
      %s322 = smul.u32 16, %s24
      %p323 = scmp.lt.s32.totalorder %s23, 1
      %s324 = scalar_select %p323, %s23, 1
      %p325 = scmp.lt.s32.totalorder %s322, 31
      %s326 = scalar_select %p325, %s322, 31
      %s327 = smul.addr %s324, 32
      %s328 = sadd.s32 %s326, %s327
      %s329 = smul.addr %s328, 4
      %s330 = scalar_lea.vmem %s0, %s329
      %p331 = pneg %p54
      %p332 = pneg %p51
      %s333 = sadd.s32 %s24, 1
      %s334 = smul.u32 %s333, 8
      %p335 = scmp.lt.s32.totalorder %s334, 15
      %s336 = scalar_select %p335, %s334, 15
      %s337 = smul.u32 2, %s336
      %p338 = scmp.lt.s32.totalorder %s23, 1
      %s339 = scalar_select %p338, %s23, 1
      %p340 = scmp.lt.s32.totalorder %s337, 31
      %s341 = scalar_select %p340, %s337, 31
      %s342 = smul.addr %s339, 32
      %s343 = sadd.s32 %s341, %s342
      %s344 = smul.addr %s343, 4
      %s345 = scalar_lea.vmem %s1, %s344
      %p346 = pneg %p90
      %p347 = pneg %p87
      %p348 = pneg %p111
      %p349 = pneg %p108
      %p350 = pneg %p132
      %p351 = pneg %p129
      %p352 = pneg %p153
      %p353 = pneg %p150
      %p354 = pneg %p174
      %p355 = pneg %p171
      %p356 = pneg %p195
      %p357 = pneg %p192
      %p358 = pneg %p216
      %p359 = pneg %p213
      %p360 = pneg %p244
      %p361 = pneg %p241
      %s362 = smul.u32 16, %s24
      %p363 = scmp.lt.s32.totalorder %s23, 1
      %s364 = scalar_select %p363, %s23, 1
      %p365 = scmp.lt.s32.totalorder %s362, 31
      %s366 = scalar_select %p365, %s362, 31
      %s367 = smul.addr %s364, 32
      %s368 = sadd.s32 %s366, %s367
      %s369 = smul.addr %s368, 8
      %s370 = scalar_lea.vmem %s8, %s369
      %s371 = smul.u32 16, %s24
      %p372 = scmp.lt.s32.totalorder %s23, 1
      %s373 = scalar_select %p372, %s23, 1
      %p374 = scmp.lt.s32.totalorder %s371, 31
      %s375 = scalar_select %p374, %s371, 31
      %s376 = smul.addr %s373, 32
      %s377 = sadd.s32 %s375, %s376
      %s378 = smul.addr %s377, 4
      %s379 = scalar_lea.vmem %s0, %s378
      %s380 = smul.u32 16, %s24
      %s381 = sadd.s32 %s24, 1
      %s382 = smul.u32 %s381, 8
      %p383 = scmp.lt.s32.totalorder %s382, 15
      %s384 = scalar_select %p383, %s382, 15
      %s385 = smul.u32 2, %s384
      %p386 = scmp.lt.s32.totalorder %s23, 1
      %s387 = scalar_select %p386, %s23, 1
      %p388 = scmp.lt.s32.totalorder %s385, 31
      %s389 = scalar_select %p388, %s385, 31
      %s390 = smul.addr %s387, 32
      %s391 = sadd.s32 %s389, %s390
      %s392 = smul.addr %s391, 4
      %s393 = scalar_lea.vmem %s1, %s392
      %s394 = sadd.s32 %s24, 1
      %s395 = smul.u32 %s394, 8
      %p396 = scmp.lt.s32.totalorder %s395, 15
      %s397 = scalar_select %p396, %s395, 15
      %s398 = smul.u32 2, %s397
      %s399 = smul.u32 16, %s24
      %p400 = scmp.lt.s32.totalorder %s23, 1
      %s401 = scalar_select %p400, %s23, 1
      %p402 = scmp.lt.s32.totalorder %s399, 31
      %s403 = scalar_select %p402, %s399, 31
      %s404 = smul.addr %s401, 32
      %s405 = sadd.s32 %s403, %s404
      %s406 = smul.addr %s405, 8
      %s407 = scalar_lea.vmem %s8, %s406
      %s408 = smul.u32 16, %s24
      %p410 = scmp.eq.s32.totalorder %s24, 1
      %v411 = vld [vmem:[%s379] sm:$0xf]
      %v412 = vld [vmem:[%s379 + $0x4] sm:$0xf]
      %v413 = vld [vmem:[%s379 + $0x8] sm:$0xf]
      %v414 = vld [vmem:[%s379 + $0xc] sm:$0xf]
      %v415 = vld [vmem:[%s379 + $0x10] sm:$0xf]
      %v416 = vld [vmem:[%s379 + $0x14] sm:$0xf]
      %v417 = vld [vmem:[%s379 + $0x18] sm:$0xf]
      %v418 = vld [vmem:[%s379 + $0x1c] sm:$0xf]
      %v419 = vld [vmem:[%s379 + $0x20] sm:$0xf]
      %v420 = vld [vmem:[%s379 + $0x24] sm:$0xf]
      %v421 = vld [vmem:[%s379 + $0x28] sm:$0xf]
      %v422 = vld [vmem:[%s379 + $0x2c] sm:$0xf]
      %v423 = vld [vmem:[%s379 + $0x30] sm:$0xf]
      %v424 = vld [vmem:[%s379 + $0x34] sm:$0xf]
      %v425 = vld [vmem:[%s379 + $0x38] sm:$0xf]
      %v426 = vld [vmem:[%s379 + $0x3c] sm:$0xf]
      %v427 = vld [vmem:[%s393] sm:$0xf]
      %v428 = vld [vmem:[%s393 + $0x4] sm:$0xf]
      %v445 = vunpack.c.l.b16 %v411
      %v446 = vunpack.c.l.b16 %v412
      %v447 = vunpack.c.l.b16 %v413
      %v448 = vunpack.c.l.b16 %v414
      %v449 = vunpack.c.l.b16 %v415
      %v450 = vunpack.c.l.b16 %v416
      %v451 = vunpack.c.l.b16 %v417
      %v452 = vunpack.c.l.b16 %v418
      %v453 = vunpack.c.l.b16 %v419
      %v454 = vunpack.c.l.b16 %v420
      %v455 = vunpack.c.l.b16 %v421
      %v456 = vunpack.c.l.b16 %v422
      %v457 = vunpack.c.l.b16 %v423
      %v458 = vunpack.c.l.b16 %v424
      %v459 = vunpack.c.l.b16 %v425
      %v460 = vunpack.c.l.b16 %v426
      %v461 = vpack.c.b16 %v446, %v445
      %v462 = vpack.c.b16 %v448, %v447
      %v463 = vpack.c.b16 %v450, %v449
      %v464 = vpack.c.b16 %v452, %v451
      %v465 = vpack.c.b16 %v454, %v453
      %v466 = vpack.c.b16 %v456, %v455
      %v467 = vpack.c.b16 %v458, %v457
      %v468 = vpack.c.b16 %v460, %v459
      %v471 = vunpack.c.l.b16 %v427
      %v472 = vunpack.c.l.b16 %v428
      %v473 = vpack.c.b16 %v472, %v471
      %v474 = vld [vmem:[%s2] sm:$0xf]
      %v475 = vld [vmem:[%s2 + $0x4] sm:$0xf]
      %v476 = vld [vmem:[%s2 + $0x8] sm:$0xf]
      %v477 = vld [vmem:[%s2 + $0xc] sm:$0xf]
      %v478 = vld [vmem:[%s2 + $0x10] sm:$0xf]
      %v479 = vld [vmem:[%s2 + $0x14] sm:$0xf]
      %v480 = vld [vmem:[%s2 + $0x18] sm:$0xf]
      %v481 = vld [vmem:[%s2 + $0x1c] sm:$0xf]
      %v482 = vld [vmem:[%s3] sm:$0x1]
      %v484 = vlaneseq
      %v485 = vshrl.u32 %v484, 7
      %v486 = vsub.s32 0, %v485
      %v487 = vrot.slane %v482, %v486
      %v497 = vunpack.c.l.b16 %v474
      %v498 = vunpack.c.l.b16 %v475
      %v499 = vunpack.c.l.b16 %v476
      %v500 = vunpack.c.l.b16 %v477
      %v501 = vunpack.c.l.b16 %v478
      %v502 = vunpack.c.l.b16 %v479
      %v503 = vunpack.c.l.b16 %v480
      %v504 = vunpack.c.l.b16 %v481
      %v505 = vpack.c.b16 %v498, %v497
      %v506 = vpack.c.b16 %v500, %v499
      %v507 = vpack.c.b16 %v502, %v501
      %v508 = vpack.c.b16 %v504, %v503
      %vm513 = vcmask 523264
      %v515 = vsel %vm513, %v461, 0
      %v518 = vsel %vm513, %v462, 0
      %v521 = vsel %vm513, %v463, 0
      %v524 = vsel %vm513, %v464, 0
      %v527 = vsel %vm513, %v465, 0
      %v530 = vsel %vm513, %v466, 0
      %v533 = vsel %vm513, %v467, 0
      %v536 = vsel %vm513, %v468, 0
      %v539 = vsel %vm513, %v473, 0
      %541 = vmatprep.subr.bf16.mxu0 0
      %542 = vmatpush1.bf16.msra.mxu0 0
      %543 = vmatprep.subr.bf16.mxu0 0
      %544 = vmatpush1.bf16.msra.mxu0 0
      %545 = vmatprep.subr.bf16.mxu0 0
      %546 = vmatpush1.bf16.msra.mxu0 0
      %547 = vmatprep.subr.bf16.mxu0 0
      %548 = vmatpush1.bf16.msra.mxu0 0
      %549 = vmatprep.subr.bf16.mxu0 0
      %550 = vmatpush1.bf16.msra.mxu0 %v508
      %551 = vmatprep.subr.bf16.mxu0 0
      %552 = vmatpush1.bf16.msra.mxu0 %v507
      %553 = vmatprep.subr.bf16.mxu0 0
      %554 = vmatpush1.bf16.msra.mxu0 %v506
      %555 = vmatprep.subr.bf16.mxu0 0
      %556 = vmatpush1.bf16.msra.mxu0 %v505
      %557 = vmatprep.subr.bf16.mxu0 0
      %558 = vmatpush2.bf16.msra.mxu0 0
      %559 = vmatprep.subr.bf16.mxu0 0
      %560 = vmatpush2.bf16.msra.mxu0 0
      %561 = vmatprep.subr.bf16.mxu0 0
      %562 = vmatpush2.bf16.msra.mxu0 0
      %563 = vmatprep.subr.bf16.mxu0 0
      %564 = vmatpush2.bf16.msra.mxu0 0
      %565 = vmatprep.subr.bf16.mxu0 0
      %566 = vmatpush2.bf16.msra.mxu0 0
      %567 = vmatprep.subr.bf16.mxu0 0
      %568 = vmatpush2.bf16.msra.mxu0 0
      %569 = vmatprep.subr.bf16.mxu0 0
      %570 = vmatpush2.bf16.msra.mxu0 0
      %571 = vmatprep.subr.bf16.mxu0 0
      %572 = vmatpush2.bf16.msra.mxu0 0
      %573 = vmatprep.mubr.bf16.mxu0 0
      %574 = vmatmul.mubr.bf16.gmra.mxu0 %v515
      %v575 = vpop.f32.mrf.mxu0
      %v576 = vadd.f32 %v487, %v575
      %v577 = vpop.f32.mrf.mxu0
      %v578 = vpop.f32.mrf.mxu0
      %v579 = vadd.f32 %v487, %v578
      %v580 = vpop.f32.mrf.mxu0
      %581 = vmatprep.mubr.bf16.mxu0 0
      %582 = vmatmul.mubr.bf16.gmra.mxu0 %v518
      %v583 = vpop.f32.mrf.mxu0
      %v584 = vadd.f32 %v487, %v583
      %v585 = vpop.f32.mrf.mxu0
      %v586 = vpop.f32.mrf.mxu0
      %v587 = vadd.f32 %v487, %v586
      %v588 = vpop.f32.mrf.mxu0
      %589 = vmatprep.mubr.bf16.mxu0 0
      %590 = vmatmul.mubr.bf16.gmra.mxu0 %v521
      %v591 = vpop.f32.mrf.mxu0
      %v592 = vadd.f32 %v487, %v591
      %v593 = vpop.f32.mrf.mxu0
      %v594 = vpop.f32.mrf.mxu0
      %v595 = vadd.f32 %v487, %v594
      %v596 = vpop.f32.mrf.mxu0
      %597 = vmatprep.mubr.bf16.mxu0 0
      %598 = vmatmul.mubr.bf16.gmra.mxu0 %v524
      %v599 = vpop.f32.mrf.mxu0
      %v600 = vadd.f32 %v487, %v599
      %v601 = vpop.f32.mrf.mxu0
      %v602 = vpop.f32.mrf.mxu0
      %v603 = vadd.f32 %v487, %v602
      %v604 = vpop.f32.mrf.mxu0
      %605 = vmatprep.mubr.bf16.mxu0 0
      %606 = vmatmul.mubr.bf16.gmra.mxu0 %v527
      %v607 = vpop.f32.mrf.mxu0
      %v608 = vadd.f32 %v487, %v607
      %v609 = vpop.f32.mrf.mxu0
      %v610 = vpop.f32.mrf.mxu0
      %v611 = vadd.f32 %v487, %v610
      %v612 = vpop.f32.mrf.mxu0
      %613 = vmatprep.mubr.bf16.mxu0 0
      %614 = vmatmul.mubr.bf16.gmra.mxu0 %v530
      %v615 = vpop.f32.mrf.mxu0
      %v616 = vadd.f32 %v487, %v615
      %v617 = vpop.f32.mrf.mxu0
      %v618 = vpop.f32.mrf.mxu0
      %v619 = vadd.f32 %v487, %v618
      %v620 = vpop.f32.mrf.mxu0
      %621 = vmatprep.mubr.bf16.mxu0 0
      %622 = vmatmul.mubr.bf16.gmra.mxu0 %v533
      %v623 = vpop.f32.mrf.mxu0
      %v624 = vadd.f32 %v487, %v623
      %v625 = vpop.f32.mrf.mxu0
      %v626 = vpop.f32.mrf.mxu0
      %v627 = vadd.f32 %v487, %v626
      %v628 = vpop.f32.mrf.mxu0
      %629 = vmatprep.mubr.bf16.mxu0 0
      %630 = vmatmul.mubr.bf16.gmra.mxu0 %v536
      %v631 = vpop.f32.mrf.mxu0
      %v632 = vadd.f32 %v487, %v631
      %v633 = vpop.f32.mrf.mxu0
      %v634 = vpop.f32.mrf.mxu0
      %v635 = vadd.f32 %v487, %v634
      %v636 = vpop.f32.mrf.mxu0
      %637 = vmatprep.mubr.bf16.mxu0 0
      %638 = vmatmul.mubr.bf16.gmra.mxu0 %v539
      %v639 = vpop.f32.mrf.mxu0
      %v640 = vadd.f32 %v487, %v639
      %v641 = vpop.f32.mrf.mxu0
      %v642 = vpop.f32.mrf.mxu0
      %v643 = vadd.f32 %v487, %v642
      %v644 = vpop.f32.mrf.mxu0
      %645 = vdwg.mxu0
      %v646 = vmax.f32 %v576, 0.0
      %v647 = vmax.f32 %v579, 0.0
      %v648 = vmax.f32 %v584, 0.0
      %v649 = vmax.f32 %v587, 0.0
      %v650 = vmax.f32 %v592, 0.0
      %v651 = vmax.f32 %v595, 0.0
      %v652 = vmax.f32 %v600, 0.0
      %v653 = vmax.f32 %v603, 0.0
      %v654 = vmax.f32 %v608, 0.0
      %v655 = vmax.f32 %v611, 0.0
      %v656 = vmax.f32 %v616, 0.0
      %v657 = vmax.f32 %v619, 0.0
      %v658 = vmax.f32 %v624, 0.0
      %v659 = vmax.f32 %v627, 0.0
      %v660 = vmax.f32 %v632, 0.0
      %v661 = vmax.f32 %v635, 0.0
      %v662 = vmax.f32 %v640, 0.0
      %v663 = vmax.f32 %v643, 0.0
      %v664 = vlaneseq
      %v665 = vshrl.u32 %v664, 7
      %v666 = vadd.s32 %v665, 8
      %v667 = vadd.s32 %v665, 16
      %v668 = vadd.s32 %v665, 24
      %v669 = vadd.s32 %v665, 32
      %v670 = vadd.s32 %v665, 40
      %v671 = vadd.s32 %v665, 48
      %v672 = vadd.s32 %v665, 56
      %v673 = vadd.s32 %v665, 64
      %v674 = vadd.s32 %v665, 72
      %v675 = vadd.s32 %v665, 80
      %v676 = vadd.s32 %v665, 88
      %v677 = vadd.s32 %v665, 96
      %v678 = vadd.s32 %v665, 104
      %v679 = vadd.s32 %v665, 112
      %v680 = vadd.s32 %v665, 120
      %v681 = vadd.s32 %v665, 128
      %v682 = vadd.s32 %v665, 136
      %vm683 = vcmp.ge.s32.totalorder %v665, 128
      %vm684 = vcmp.ge.s32.totalorder %v666, 128
      %vm685 = vcmp.ge.s32.totalorder %v667, 128
      %vm686 = vcmp.ge.s32.totalorder %v668, 128
      %vm687 = vcmp.ge.s32.totalorder %v669, 128
      %vm688 = vcmp.ge.s32.totalorder %v670, 128
      %vm689 = vcmp.ge.s32.totalorder %v671, 128
      %vm690 = vcmp.ge.s32.totalorder %v672, 128
      %vm691 = vcmp.ge.s32.totalorder %v673, 128
      %vm692 = vcmp.ge.s32.totalorder %v674, 128
      %vm693 = vcmp.ge.s32.totalorder %v675, 128
      %vm694 = vcmp.ge.s32.totalorder %v676, 128
      %vm695 = vcmp.ge.s32.totalorder %v677, 128
      %vm696 = vcmp.ge.s32.totalorder %v678, 128
      %vm697 = vcmp.ge.s32.totalorder %v679, 128
      %vm698 = vcmp.ge.s32.totalorder %v680, 128
      %vm699 = vcmp.ge.s32.totalorder %v681, 128
      %vm700 = vcmp.ge.s32.totalorder %v682, 128
      %s701 = scalar_select %p410, 1, 0
      %v702 = vstv %s701
      %vm703 = vcmp.eq.s32.totalorder %v702, 1
      %vm704 = vmand %vm683, %vm703
      %vm705 = vmand %vm684, %vm703
      %vm706 = vmand %vm685, %vm703
      %vm707 = vmand %vm686, %vm703
      %vm708 = vmand %vm687, %vm703
      %vm709 = vmand %vm688, %vm703
      %vm710 = vmand %vm689, %vm703
      %vm711 = vmand %vm690, %vm703
      %vm712 = vmand %vm691, %vm703
      %vm713 = vmand %vm692, %vm703
      %vm714 = vmand %vm693, %vm703
      %vm715 = vmand %vm694, %vm703
      %vm716 = vmand %vm695, %vm703
      %vm717 = vmand %vm696, %vm703
      %vm718 = vmand %vm697, %vm703
      %vm719 = vmand %vm698, %vm703
      %vm720 = vmand %vm699, %vm703
      %vm721 = vmand %vm700, %vm703
      %v722 = vsel %vm704, 1, 0
      %v723 = vsel %vm705, 1, 0
      %v724 = vsel %vm706, 1, 0
      %v725 = vsel %vm707, 1, 0
      %v726 = vsel %vm708, 1, 0
      %v727 = vsel %vm709, 1, 0
      %v728 = vsel %vm710, 1, 0
      %v729 = vsel %vm711, 1, 0
      %v730 = vsel %vm712, 1, 0
      %v731 = vsel %vm713, 1, 0
      %v732 = vsel %vm714, 1, 0
      %v733 = vsel %vm715, 1, 0
      %v734 = vsel %vm716, 1, 0
      %v735 = vsel %vm717, 1, 0
      %v736 = vsel %vm718, 1, 0
      %v737 = vsel %vm719, 1, 0
      %v738 = vsel %vm720, 1, 0
      %v739 = vsel %vm721, 1, 0
      %vm740 = vcmp.eq.s32.totalorder %v722, 1
      %vm741 = vcmp.eq.s32.totalorder %v723, 1
      %vm742 = vcmp.eq.s32.totalorder %v724, 1
      %vm743 = vcmp.eq.s32.totalorder %v725, 1
      %vm744 = vcmp.eq.s32.totalorder %v726, 1
      %vm745 = vcmp.eq.s32.totalorder %v727, 1
      %vm746 = vcmp.eq.s32.totalorder %v728, 1
      %vm747 = vcmp.eq.s32.totalorder %v729, 1
      %vm748 = vcmp.eq.s32.totalorder %v730, 1
      %vm749 = vcmp.eq.s32.totalorder %v731, 1
      %vm750 = vcmp.eq.s32.totalorder %v732, 1
      %vm751 = vcmp.eq.s32.totalorder %v733, 1
      %vm752 = vcmp.eq.s32.totalorder %v734, 1
      %vm753 = vcmp.eq.s32.totalorder %v735, 1
      %vm754 = vcmp.eq.s32.totalorder %v736, 1
      %vm755 = vcmp.eq.s32.totalorder %v737, 1
      %vm756 = vcmp.eq.s32.totalorder %v738, 1
      %vm757 = vcmp.eq.s32.totalorder %v739, 1
      %v758 = vsel %vm740, 0.0, %v646
      %v759 = vsel %vm741, 0.0, %v647
      %v760 = vsel %vm742, 0.0, %v648
      %v761 = vsel %vm743, 0.0, %v649
      %v762 = vsel %vm744, 0.0, %v650
      %v763 = vsel %vm745, 0.0, %v651
      %v764 = vsel %vm746, 0.0, %v652
      %v765 = vsel %vm747, 0.0, %v653
      %v766 = vsel %vm748, 0.0, %v654
      %v767 = vsel %vm749, 0.0, %v655
      %v768 = vsel %vm750, 0.0, %v656
      %v769 = vsel %vm751, 0.0, %v657
      %v770 = vsel %vm752, 0.0, %v658
      %v771 = vsel %vm753, 0.0, %v659
      %v772 = vsel %vm754, 0.0, %v660
      %v773 = vsel %vm755, 0.0, %v661
      %v774 = vsel %vm756, 0.0, %v662
      %v775 = vsel %vm757, 0.0, %v663
      %vm776 = vcmp.lt.s32.totalorder %v665, 0
      %v777 = vsub.s32 0, %v665
      %v778 = vsel %vm776, %v777, %v665
      %v779 = vshrl.u32 %v778, 4
      %v780 = vand.u32 %v778, 15
      %v781 = vsub.s32 0, %v780
      %v782 = vsel %vm776, %v781, %v780
      %vm783 = vcmp.lt.s32.totalorder %v666, 0
      %v784 = vsub.s32 0, %v666
      %v785 = vsel %vm783, %v784, %v666
      %v786 = vshrl.u32 %v785, 4
      %v787 = vand.u32 %v785, 15
      %v788 = vsub.s32 0, %v787
      %v789 = vsel %vm783, %v788, %v787
      %vm790 = vcmp.lt.s32.totalorder %v667, 0
      %v791 = vsub.s32 0, %v667
      %v792 = vsel %vm790, %v791, %v667
      %v793 = vshrl.u32 %v792, 4
      %v794 = vand.u32 %v792, 15
      %v795 = vsub.s32 0, %v794
      %v796 = vsel %vm790, %v795, %v794
      %vm797 = vcmp.lt.s32.totalorder %v668, 0
      %v798 = vsub.s32 0, %v668
      %v799 = vsel %vm797, %v798, %v668
      %v800 = vshrl.u32 %v799, 4
      %v801 = vand.u32 %v799, 15
      %v802 = vsub.s32 0, %v801
      %v803 = vsel %vm797, %v802, %v801
      %vm804 = vcmp.lt.s32.totalorder %v669, 0
      %v805 = vsub.s32 0, %v669
      %v806 = vsel %vm804, %v805, %v669
      %v807 = vshrl.u32 %v806, 4
      %v808 = vand.u32 %v806, 15
      %v809 = vsub.s32 0, %v808
      %v810 = vsel %vm804, %v809, %v808
      %vm811 = vcmp.lt.s32.totalorder %v670, 0
      %v812 = vsub.s32 0, %v670
      %v813 = vsel %vm811, %v812, %v670
      %v814 = vshrl.u32 %v813, 4
      %v815 = vand.u32 %v813, 15
      %v816 = vsub.s32 0, %v815
      %v817 = vsel %vm811, %v816, %v815
      %vm818 = vcmp.lt.s32.totalorder %v671, 0
      %v819 = vsub.s32 0, %v671
      %v820 = vsel %vm818, %v819, %v671
      %v821 = vshrl.u32 %v820, 4
      %v822 = vand.u32 %v820, 15
      %v823 = vsub.s32 0, %v822
      %v824 = vsel %vm818, %v823, %v822
      %vm825 = vcmp.lt.s32.totalorder %v672, 0
      %v826 = vsub.s32 0, %v672
      %v827 = vsel %vm825, %v826, %v672
      %v828 = vshrl.u32 %v827, 4
      %v829 = vand.u32 %v827, 15
      %v830 = vsub.s32 0, %v829
      %v831 = vsel %vm825, %v830, %v829
      %vm832 = vcmp.lt.s32.totalorder %v673, 0
      %v833 = vsub.s32 0, %v673
      %v834 = vsel %vm832, %v833, %v673
      %v835 = vshrl.u32 %v834, 4
      %v836 = vand.u32 %v834, 15
      %v837 = vsub.s32 0, %v836
      %v838 = vsel %vm832, %v837, %v836
      %vm839 = vcmp.lt.s32.totalorder %v674, 0
      %v840 = vsub.s32 0, %v674
      %v841 = vsel %vm839, %v840, %v674
      %v842 = vshrl.u32 %v841, 4
      %v843 = vand.u32 %v841, 15
      %v844 = vsub.s32 0, %v843
      %v845 = vsel %vm839, %v844, %v843
      %vm846 = vcmp.lt.s32.totalorder %v675, 0
      %v847 = vsub.s32 0, %v675
      %v848 = vsel %vm846, %v847, %v675
      %v849 = vshrl.u32 %v848, 4
      %v850 = vand.u32 %v848, 15
      %v851 = vsub.s32 0, %v850
      %v852 = vsel %vm846, %v851, %v850
      %vm853 = vcmp.lt.s32.totalorder %v676, 0
      %v854 = vsub.s32 0, %v676
      %v855 = vsel %vm853, %v854, %v676
      %v856 = vshrl.u32 %v855, 4
      %v857 = vand.u32 %v855, 15
      %v858 = vsub.s32 0, %v857
      %v859 = vsel %vm853, %v858, %v857
      %vm860 = vcmp.lt.s32.totalorder %v677, 0
      %v861 = vsub.s32 0, %v677
      %v862 = vsel %vm860, %v861, %v677
      %v863 = vshrl.u32 %v862, 4
      %v864 = vand.u32 %v862, 15
      %v865 = vsub.s32 0, %v864
      %v866 = vsel %vm860, %v865, %v864
      %vm867 = vcmp.lt.s32.totalorder %v678, 0
      %v868 = vsub.s32 0, %v678
      %v869 = vsel %vm867, %v868, %v678
      %v870 = vshrl.u32 %v869, 4
      %v871 = vand.u32 %v869, 15
      %v872 = vsub.s32 0, %v871
      %v873 = vsel %vm867, %v872, %v871
      %vm874 = vcmp.lt.s32.totalorder %v679, 0
      %v875 = vsub.s32 0, %v679
      %v876 = vsel %vm874, %v875, %v679
      %v877 = vshrl.u32 %v876, 4
      %v878 = vand.u32 %v876, 15
      %v879 = vsub.s32 0, %v878
      %v880 = vsel %vm874, %v879, %v878
      %vm881 = vcmp.lt.s32.totalorder %v680, 0
      %v882 = vsub.s32 0, %v680
      %v883 = vsel %vm881, %v882, %v680
      %v884 = vshrl.u32 %v883, 4
      %v885 = vand.u32 %v883, 15
      %v886 = vsub.s32 0, %v885
      %v887 = vsel %vm881, %v886, %v885
      %vm888 = vcmp.ne.s32.totalorder %v782, 0
      %vm889 = vcmp.ne.s32.totalorder %v789, 0
      %vm890 = vcmp.ne.s32.totalorder %v796, 0
      %vm891 = vcmp.ne.s32.totalorder %v803, 0
      %vm892 = vcmp.ne.s32.totalorder %v810, 0
      %vm893 = vcmp.ne.s32.totalorder %v817, 0
      %vm894 = vcmp.ne.s32.totalorder %v824, 0
      %vm895 = vcmp.ne.s32.totalorder %v831, 0
      %vm896 = vcmp.ne.s32.totalorder %v838, 0
      %vm897 = vcmp.ne.s32.totalorder %v845, 0
      %vm898 = vcmp.ne.s32.totalorder %v852, 0
      %vm899 = vcmp.ne.s32.totalorder %v859, 0
      %vm900 = vcmp.ne.s32.totalorder %v866, 0
      %vm901 = vcmp.ne.s32.totalorder %v873, 0
      %vm902 = vcmp.ne.s32.totalorder %v880, 0
      %vm903 = vcmp.ne.s32.totalorder %v887, 0
      %vm904 = vcmp.lt.s32.totalorder %v782, 0
      %vm905 = vcmp.lt.s32.totalorder %v789, 0
      %vm906 = vcmp.lt.s32.totalorder %v796, 0
      %vm907 = vcmp.lt.s32.totalorder %v803, 0
      %vm908 = vcmp.lt.s32.totalorder %v810, 0
      %vm909 = vcmp.lt.s32.totalorder %v817, 0
      %vm910 = vcmp.lt.s32.totalorder %v824, 0
      %vm911 = vcmp.lt.s32.totalorder %v831, 0
      %vm912 = vcmp.lt.s32.totalorder %v838, 0
      %vm913 = vcmp.lt.s32.totalorder %v845, 0
      %vm914 = vcmp.lt.s32.totalorder %v852, 0
      %vm915 = vcmp.lt.s32.totalorder %v859, 0
      %vm916 = vcmp.lt.s32.totalorder %v866, 0
      %vm917 = vcmp.lt.s32.totalorder %v873, 0
      %vm918 = vcmp.lt.s32.totalorder %v880, 0
      %vm919 = vcmp.lt.s32.totalorder %v887, 0
      %vm920 = vmand %vm904, %vm888
      %vm921 = vmand %vm905, %vm889
      %vm922 = vmand %vm906, %vm890
      %vm923 = vmand %vm907, %vm891
      %vm924 = vmand %vm908, %vm892
      %vm925 = vmand %vm909, %vm893
      %vm926 = vmand %vm910, %vm894
      %vm927 = vmand %vm911, %vm895
      %vm928 = vmand %vm912, %vm896
      %vm929 = vmand %vm913, %vm897
      %vm930 = vmand %vm914, %vm898
      %vm931 = vmand %vm915, %vm899
      %vm932 = vmand %vm916, %vm900
      %vm933 = vmand %vm917, %vm901
      %vm934 = vmand %vm918, %vm902
      %vm935 = vmand %vm919, %vm903
      %v936 = vadd.s32 %v782, 16
      %v937 = vadd.s32 %v789, 16
      %v938 = vadd.s32 %v796, 16
      %v939 = vadd.s32 %v803, 16
      %v940 = vadd.s32 %v810, 16
      %v941 = vadd.s32 %v817, 16
      %v942 = vadd.s32 %v824, 16
      %v943 = vadd.s32 %v831, 16
      %v944 = vadd.s32 %v838, 16
      %v945 = vadd.s32 %v845, 16
      %v946 = vadd.s32 %v852, 16
      %v947 = vadd.s32 %v859, 16
      %v948 = vadd.s32 %v866, 16
      %v949 = vadd.s32 %v873, 16
      %v950 = vadd.s32 %v880, 16
      %v951 = vadd.s32 %v887, 16
      %v952 = vsel %vm920, %v936, %v782
      %v953 = vsel %vm921, %v937, %v789
      %v954 = vsel %vm922, %v938, %v796
      %v955 = vsel %vm923, %v939, %v803
      %v956 = vsel %vm924, %v940, %v810
      %v957 = vsel %vm925, %v941, %v817
      %v958 = vsel %vm926, %v942, %v824
      %v959 = vsel %vm927, %v943, %v831
      %v960 = vsel %vm928, %v944, %v838
      %v961 = vsel %vm929, %v945, %v845
      %v962 = vsel %vm930, %v946, %v852
      %v963 = vsel %vm931, %v947, %v859
      %v964 = vsel %vm932, %v948, %v866
      %v965 = vsel %vm933, %v949, %v873
      %v966 = vsel %vm934, %v950, %v880
      %v967 = vsel %vm935, %v951, %v887
      %vm968 = vcmp.ne.s32.totalorder %v952, 15
      %vm969 = vcmp.ne.s32.totalorder %v953, 15
      %vm970 = vcmp.ne.s32.totalorder %v954, 15
      %vm971 = vcmp.ne.s32.totalorder %v955, 15
      %vm972 = vcmp.ne.s32.totalorder %v956, 15
      %vm973 = vcmp.ne.s32.totalorder %v957, 15
      %vm974 = vcmp.ne.s32.totalorder %v958, 15
      %vm975 = vcmp.ne.s32.totalorder %v959, 15
      %vm976 = vcmp.ne.s32.totalorder %v960, 15
      %vm977 = vcmp.ne.s32.totalorder %v961, 15
      %vm978 = vcmp.ne.s32.totalorder %v962, 15
      %vm979 = vcmp.ne.s32.totalorder %v963, 15
      %vm980 = vcmp.ne.s32.totalorder %v964, 15
      %vm981 = vcmp.ne.s32.totalorder %v965, 15
      %vm982 = vcmp.ne.s32.totalorder %v966, 15
      %vm983 = vcmp.ne.s32.totalorder %v967, 15
      %v984 = vsel %vm968, 1, 0
      %v985 = vsel %vm969, 1, 0
      %v986 = vsel %vm970, 1, 0
      %v987 = vsel %vm971, 1, 0
      %v988 = vsel %vm972, 1, 0
      %v989 = vsel %vm973, 1, 0
      %v990 = vsel %vm974, 1, 0
      %v991 = vsel %vm975, 1, 0
      %v992 = vsel %vm976, 1, 0
      %v993 = vsel %vm977, 1, 0
      %v994 = vsel %vm978, 1, 0
      %v995 = vsel %vm979, 1, 0
      %v996 = vsel %vm980, 1, 0
      %v997 = vsel %vm981, 1, 0
      %v998 = vsel %vm982, 1, 0
      %v999 = vsel %vm983, 1, 0
      %vm1000 = vcmp.eq.s32.totalorder %v984, 1
      %vm1001 = vcmp.eq.s32.totalorder %v985, 1
      %vm1002 = vcmp.eq.s32.totalorder %v986, 1
      %vm1003 = vcmp.eq.s32.totalorder %v987, 1
      %vm1004 = vcmp.eq.s32.totalorder %v988, 1
      %vm1005 = vcmp.eq.s32.totalorder %v989, 1
      %vm1006 = vcmp.eq.s32.totalorder %v990, 1
      %vm1007 = vcmp.eq.s32.totalorder %v991, 1
      %vm1008 = vcmp.eq.s32.totalorder %v992, 1
      %vm1009 = vcmp.eq.s32.totalorder %v993, 1
      %vm1010 = vcmp.eq.s32.totalorder %v994, 1
      %vm1011 = vcmp.eq.s32.totalorder %v995, 1
      %vm1012 = vcmp.eq.s32.totalorder %v996, 1
      %vm1013 = vcmp.eq.s32.totalorder %v997, 1
      %vm1014 = vcmp.eq.s32.totalorder %v998, 1
      %vm1015 = vcmp.eq.s32.totalorder %v999, 1
      %vm1033 = vcmask 1046528
      %v1034 = vrot.slane %v758, 1
      %v1035 = vrot.slane %v759, 1
      %v1036 = vsel %vm1033, %v1034, %v1035
      %v1037 = vrot.slane %v760, 1
      %v1038 = vsel %vm1033, %v1035, %v1037
      %v1039 = vrot.slane %v761, 1
      %v1040 = vsel %vm1033, %v1037, %v1039
      %v1041 = vrot.slane %v762, 1
      %v1042 = vsel %vm1033, %v1039, %v1041
      %v1043 = vrot.slane %v763, 1
      %v1044 = vsel %vm1033, %v1041, %v1043
      %v1045 = vrot.slane %v764, 1
      %v1046 = vsel %vm1033, %v1043, %v1045
      %v1047 = vrot.slane %v765, 1
      %v1048 = vsel %vm1033, %v1045, %v1047
      %v1049 = vrot.slane %v766, 1
      %v1050 = vsel %vm1033, %v1047, %v1049
      %v1051 = vrot.slane %v767, 1
      %v1052 = vsel %vm1033, %v1049, %v1051
      %v1053 = vrot.slane %v768, 1
      %v1054 = vsel %vm1033, %v1051, %v1053
      %v1055 = vrot.slane %v769, 1
      %v1056 = vsel %vm1033, %v1053, %v1055
      %v1057 = vrot.slane %v770, 1
      %v1058 = vsel %vm1033, %v1055, %v1057
      %v1059 = vrot.slane %v771, 1
      %v1060 = vsel %vm1033, %v1057, %v1059
      %v1061 = vrot.slane %v772, 1
      %v1062 = vsel %vm1033, %v1059, %v1061
      %v1063 = vrot.slane %v773, 1
      %v1064 = vsel %vm1033, %v1061, %v1063
      %v1065 = vrot.slane %v774, 1
      %v1066 = vsel %vm1033, %v1063, %v1065
      %v1083 = vsel %vm1000, %v1036, 0.0
      %v1084 = vsel %vm1001, %v1038, 0.0
      %v1085 = vsel %vm1002, %v1040, 0.0
      %v1086 = vsel %vm1003, %v1042, 0.0
      %v1087 = vsel %vm1004, %v1044, 0.0
      %v1088 = vsel %vm1005, %v1046, 0.0
      %v1089 = vsel %vm1006, %v1048, 0.0
      %v1090 = vsel %vm1007, %v1050, 0.0
      %v1091 = vsel %vm1008, %v1052, 0.0
      %v1092 = vsel %vm1009, %v1054, 0.0
      %v1093 = vsel %vm1010, %v1056, 0.0
      %v1094 = vsel %vm1011, %v1058, 0.0
      %v1095 = vsel %vm1012, %v1060, 0.0
      %v1096 = vsel %vm1013, %v1062, 0.0
      %v1097 = vsel %vm1014, %v1064, 0.0
      %v1098 = vsel %vm1015, %v1066, 0.0
      %v1101 = vrot.slane %v775, 1
      %v1102 = vsel %vm1033, %v1065, %v1101
      %v1103 = vrot.slane 0.0, 1
      %v1104 = vsel %vm1033, %v1101, %v1103
      %v1107 = vsel %vm1000, %v1040, 0.0
      %v1108 = vsel %vm1001, %v1042, 0.0
      %v1109 = vsel %vm1002, %v1044, 0.0
      %v1110 = vsel %vm1003, %v1046, 0.0
      %v1111 = vsel %vm1004, %v1048, 0.0
      %v1112 = vsel %vm1005, %v1050, 0.0
      %v1113 = vsel %vm1006, %v1052, 0.0
      %v1114 = vsel %vm1007, %v1054, 0.0
      %v1115 = vsel %vm1008, %v1056, 0.0
      %v1116 = vsel %vm1009, %v1058, 0.0
      %v1117 = vsel %vm1010, %v1060, 0.0
      %v1118 = vsel %vm1011, %v1062, 0.0
      %v1119 = vsel %vm1012, %v1064, 0.0
      %v1120 = vsel %vm1013, %v1066, 0.0
      %v1121 = vsel %vm1014, %v1102, 0.0
      %v1122 = vsel %vm1015, %v1104, 0.0
      %v1123 = vpack.c.bf16 %v759, %v758
      %v1124 = vpack.c.bf16 %v761, %v760
      %v1125 = vpack.c.bf16 %v763, %v762
      %v1126 = vpack.c.bf16 %v765, %v764
      %v1127 = vpack.c.bf16 %v767, %v766
      %v1128 = vpack.c.bf16 %v769, %v768
      %v1129 = vpack.c.bf16 %v771, %v770
      %v1130 = vpack.c.bf16 %v773, %v772
      %v1131 = vld [vmem:[%s4] sm:$0xf]
      %v1132 = vld [vmem:[%s4 + $0x4] sm:$0xf]
      %v1133 = vpack.c.bf16 %v1084, %v1083
      %v1134 = vpack.c.bf16 %v1086, %v1085
      %v1135 = vpack.c.bf16 %v1088, %v1087
      %v1136 = vpack.c.bf16 %v1090, %v1089
      %v1137 = vpack.c.bf16 %v1092, %v1091
      %v1138 = vpack.c.bf16 %v1094, %v1093
      %v1139 = vpack.c.bf16 %v1096, %v1095
      %v1140 = vpack.c.bf16 %v1098, %v1097
      %v1141 = vld [vmem:[%s4 + $0x8] sm:$0xf]
      %v1142 = vld [vmem:[%s4 + $0xc] sm:$0xf]
      %v1145 = vunpack.c.l.b16 %v1141
      %v1146 = vunpack.c.l.b16 %v1142
      %v1147 = vpack.c.b16 %v1146, %v1145
      %vm1149 = vcmask 130048
      %v1151 = vsel %vm1149, %v1133, 0
      %v1154 = vsel %vm1149, %v1134, 0
      %v1157 = vsel %vm1149, %v1135, 0
      %v1160 = vsel %vm1149, %v1136, 0
      %v1163 = vsel %vm1149, %v1137, 0
      %v1166 = vsel %vm1149, %v1138, 0
      %v1169 = vsel %vm1149, %v1139, 0
      %v1172 = vsel %vm1149, %v1140, 0
      %1174 = vmatprep.subr.bf16.mxu0 0
      %1175 = vmatpush1.bf16.msra.mxu0 0
      %1176 = vmatprep.subr.bf16.mxu0 0
      %1177 = vmatpush1.bf16.msra.mxu0 0
      %1178 = vmatprep.subr.bf16.mxu0 0
      %1179 = vmatpush1.bf16.msra.mxu0 0
      %1180 = vmatprep.subr.bf16.mxu0 0
      %1181 = vmatpush1.bf16.msra.mxu0 0
      %1182 = vmatprep.subr.bf16.mxu0 0
      %1183 = vmatpush1.bf16.msra.mxu0 0
      %1184 = vmatprep.subr.bf16.mxu0 0
      %1185 = vmatpush1.bf16.msra.mxu0 0
      %1186 = vmatprep.subr.bf16.mxu0 0
      %1187 = vmatpush1.bf16.msra.mxu0 0
      %1188 = vmatprep.subr.bf16.mxu0 0
      %1189 = vmatpush1.bf16.msra.mxu0 %v1147
      %1190 = vmatprep.subr.bf16.mxu0 0
      %1191 = vmatpush2.bf16.msra.mxu0 0
      %1192 = vmatprep.subr.bf16.mxu0 0
      %1193 = vmatpush2.bf16.msra.mxu0 0
      %1194 = vmatprep.subr.bf16.mxu0 0
      %1195 = vmatpush2.bf16.msra.mxu0 0
      %1196 = vmatprep.subr.bf16.mxu0 0
      %1197 = vmatpush2.bf16.msra.mxu0 0
      %1198 = vmatprep.subr.bf16.mxu0 0
      %1199 = vmatpush2.bf16.msra.mxu0 0
      %1200 = vmatprep.subr.bf16.mxu0 0
      %1201 = vmatpush2.bf16.msra.mxu0 0
      %1202 = vmatprep.subr.bf16.mxu0 0
      %1203 = vmatpush2.bf16.msra.mxu0 0
      %1204 = vmatprep.subr.bf16.mxu0 0
      %1205 = vmatpush2.bf16.msra.mxu0 0
      %1206 = vmatprep.mubr.bf16.mxu0 0
      %1207 = vmatmul.mubr.bf16.gmra.mxu0 %v1151
      %v1208 = vpop.f32.mrf.mxu0
      %v1209 = vadd.f32 0.0, %v1208
      %v1210 = vpop.f32.mrf.mxu0
      %v1211 = vpop.f32.mrf.mxu0
      %v1212 = vadd.f32 0.0, %v1211
      %v1213 = vpop.f32.mrf.mxu0
      %1214 = vmatprep.mubr.bf16.mxu0 0
      %1215 = vmatmul.mubr.bf16.gmra.mxu0 %v1154
      %v1216 = vpop.f32.mrf.mxu0
      %v1217 = vadd.f32 0.0, %v1216
      %v1218 = vpop.f32.mrf.mxu0
      %v1219 = vpop.f32.mrf.mxu0
      %v1220 = vadd.f32 0.0, %v1219
      %v1221 = vpop.f32.mrf.mxu0
      %1222 = vmatprep.mubr.bf16.mxu0 0
      %1223 = vmatmul.mubr.bf16.gmra.mxu0 %v1157
      %v1224 = vpop.f32.mrf.mxu0
      %v1225 = vadd.f32 0.0, %v1224
      %v1226 = vpop.f32.mrf.mxu0
      %v1227 = vpop.f32.mrf.mxu0
      %v1228 = vadd.f32 0.0, %v1227
      %v1229 = vpop.f32.mrf.mxu0
      %1230 = vmatprep.mubr.bf16.mxu0 0
      %1231 = vmatmul.mubr.bf16.gmra.mxu0 %v1160
      %v1232 = vpop.f32.mrf.mxu0
      %v1233 = vadd.f32 0.0, %v1232
      %v1234 = vpop.f32.mrf.mxu0
      %v1235 = vpop.f32.mrf.mxu0
      %v1236 = vadd.f32 0.0, %v1235
      %v1237 = vpop.f32.mrf.mxu0
      %1238 = vmatprep.mubr.bf16.mxu0 0
      %1239 = vmatmul.mubr.bf16.gmra.mxu0 %v1163
      %v1240 = vpop.f32.mrf.mxu0
      %v1241 = vadd.f32 0.0, %v1240
      %v1242 = vpop.f32.mrf.mxu0
      %v1243 = vpop.f32.mrf.mxu0
      %v1244 = vadd.f32 0.0, %v1243
      %v1245 = vpop.f32.mrf.mxu0
      %1246 = vmatprep.mubr.bf16.mxu0 0
      %1247 = vmatmul.mubr.bf16.gmra.mxu0 %v1166
      %v1248 = vpop.f32.mrf.mxu0
      %v1249 = vadd.f32 0.0, %v1248
      %v1250 = vpop.f32.mrf.mxu0
      %v1251 = vpop.f32.mrf.mxu0
      %v1252 = vadd.f32 0.0, %v1251
      %v1253 = vpop.f32.mrf.mxu0
      %1254 = vmatprep.mubr.bf16.mxu0 0
      %1255 = vmatmul.mubr.bf16.gmra.mxu0 %v1169
      %v1256 = vpop.f32.mrf.mxu0
      %v1257 = vadd.f32 0.0, %v1256
      %v1258 = vpop.f32.mrf.mxu0
      %v1259 = vpop.f32.mrf.mxu0
      %v1260 = vadd.f32 0.0, %v1259
      %v1261 = vpop.f32.mrf.mxu0
      %1262 = vmatprep.mubr.bf16.mxu0 0
      %1263 = vmatmul.mubr.bf16.gmra.mxu0 %v1172
      %v1264 = vpop.f32.mrf.mxu0
      %v1265 = vadd.f32 0.0, %v1264
      %v1266 = vpop.f32.mrf.mxu0
      %v1267 = vpop.f32.mrf.mxu0
      %v1268 = vadd.f32 0.0, %v1267
      %v1269 = vpop.f32.mrf.mxu0
      %1270 = vdwg.mxu0
      %v1273 = vunpack.c.l.b16 %v1131
      %v1274 = vunpack.c.l.b16 %v1132
      %v1275 = vpack.c.b16 %v1274, %v1273
      %v1278 = vsel %vm1149, %v1123, 0
      %v1281 = vsel %vm1149, %v1124, 0
      %v1284 = vsel %vm1149, %v1125, 0
      %v1287 = vsel %vm1149, %v1126, 0
      %v1290 = vsel %vm1149, %v1127, 0
      %v1293 = vsel %vm1149, %v1128, 0
      %v1296 = vsel %vm1149, %v1129, 0
      %v1299 = vsel %vm1149, %v1130, 0
      %1301 = vmatprep.subr.bf16.mxu0 0
      %1302 = vmatpush1.bf16.msra.mxu0 0
      %1303 = vmatprep.subr.bf16.mxu0 0
      %1304 = vmatpush1.bf16.msra.mxu0 0
      %1305 = vmatprep.subr.bf16.mxu0 0
      %1306 = vmatpush1.bf16.msra.mxu0 0
      %1307 = vmatprep.subr.bf16.mxu0 0
      %1308 = vmatpush1.bf16.msra.mxu0 0
      %1309 = vmatprep.subr.bf16.mxu0 0
      %1310 = vmatpush1.bf16.msra.mxu0 0
      %1311 = vmatprep.subr.bf16.mxu0 0
      %1312 = vmatpush1.bf16.msra.mxu0 0
      %1313 = vmatprep.subr.bf16.mxu0 0
      %1314 = vmatpush1.bf16.msra.mxu0 0
      %1315 = vmatprep.subr.bf16.mxu0 0
      %1316 = vmatpush1.bf16.msra.mxu0 %v1275
      %1317 = vmatprep.subr.bf16.mxu0 0
      %1318 = vmatpush2.bf16.msra.mxu0 0
      %1319 = vmatprep.subr.bf16.mxu0 0
      %1320 = vmatpush2.bf16.msra.mxu0 0
      %1321 = vmatprep.subr.bf16.mxu0 0
      %1322 = vmatpush2.bf16.msra.mxu0 0
      %1323 = vmatprep.subr.bf16.mxu0 0
      %1324 = vmatpush2.bf16.msra.mxu0 0
      %1325 = vmatprep.subr.bf16.mxu0 0
      %1326 = vmatpush2.bf16.msra.mxu0 0
      %1327 = vmatprep.subr.bf16.mxu0 0
      %1328 = vmatpush2.bf16.msra.mxu0 0
      %1329 = vmatprep.subr.bf16.mxu0 0
      %1330 = vmatpush2.bf16.msra.mxu0 0
      %1331 = vmatprep.subr.bf16.mxu0 0
      %1332 = vmatpush2.bf16.msra.mxu0 0
      %1333 = vmatprep.mubr.bf16.mxu0 0
      %1334 = vmatmul.mubr.bf16.gmra.mxu0 %v1278
      %v1335 = vpop.f32.mrf.mxu0
      %v1336 = vadd.f32 %v1209, %v1335
      %v1337 = vpop.f32.mrf.mxu0
      %v1338 = vpop.f32.mrf.mxu0
      %v1339 = vadd.f32 %v1212, %v1338
      %v1340 = vpop.f32.mrf.mxu0
      %1341 = vmatprep.mubr.bf16.mxu0 0
      %1342 = vmatmul.mubr.bf16.gmra.mxu0 %v1281
      %v1343 = vpop.f32.mrf.mxu0
      %v1344 = vadd.f32 %v1217, %v1343
      %v1345 = vpop.f32.mrf.mxu0
      %v1346 = vpop.f32.mrf.mxu0
      %v1347 = vadd.f32 %v1220, %v1346
      %v1348 = vpop.f32.mrf.mxu0
      %1349 = vmatprep.mubr.bf16.mxu0 0
      %1350 = vmatmul.mubr.bf16.gmra.mxu0 %v1284
      %v1351 = vpop.f32.mrf.mxu0
      %v1352 = vadd.f32 %v1225, %v1351
      %v1353 = vpop.f32.mrf.mxu0
      %v1354 = vpop.f32.mrf.mxu0
      %v1355 = vadd.f32 %v1228, %v1354
      %v1356 = vpop.f32.mrf.mxu0
      %1357 = vmatprep.mubr.bf16.mxu0 0
      %1358 = vmatmul.mubr.bf16.gmra.mxu0 %v1287
      %v1359 = vpop.f32.mrf.mxu0
      %v1360 = vadd.f32 %v1233, %v1359
      %v1361 = vpop.f32.mrf.mxu0
      %v1362 = vpop.f32.mrf.mxu0
      %v1363 = vadd.f32 %v1236, %v1362
      %v1364 = vpop.f32.mrf.mxu0
      %1365 = vmatprep.mubr.bf16.mxu0 0
      %1366 = vmatmul.mubr.bf16.gmra.mxu0 %v1290
      %v1367 = vpop.f32.mrf.mxu0
      %v1368 = vadd.f32 %v1241, %v1367
      %v1369 = vpop.f32.mrf.mxu0
      %v1370 = vpop.f32.mrf.mxu0
      %v1371 = vadd.f32 %v1244, %v1370
      %v1372 = vpop.f32.mrf.mxu0
      %1373 = vmatprep.mubr.bf16.mxu0 0
      %1374 = vmatmul.mubr.bf16.gmra.mxu0 %v1293
      %v1375 = vpop.f32.mrf.mxu0
      %v1376 = vadd.f32 %v1249, %v1375
      %v1377 = vpop.f32.mrf.mxu0
      %v1378 = vpop.f32.mrf.mxu0
      %v1379 = vadd.f32 %v1252, %v1378
      %v1380 = vpop.f32.mrf.mxu0
      %1381 = vmatprep.mubr.bf16.mxu0 0
      %1382 = vmatmul.mubr.bf16.gmra.mxu0 %v1296
      %v1383 = vpop.f32.mrf.mxu0
      %v1384 = vadd.f32 %v1257, %v1383
      %v1385 = vpop.f32.mrf.mxu0
      %v1386 = vpop.f32.mrf.mxu0
      %v1387 = vadd.f32 %v1260, %v1386
      %v1388 = vpop.f32.mrf.mxu0
      %1389 = vmatprep.mubr.bf16.mxu0 0
      %1390 = vmatmul.mubr.bf16.gmra.mxu0 %v1299
      %v1391 = vpop.f32.mrf.mxu0
      %v1392 = vadd.f32 %v1265, %v1391
      %v1393 = vpop.f32.mrf.mxu0
      %v1394 = vpop.f32.mrf.mxu0
      %v1395 = vadd.f32 %v1268, %v1394
      %v1396 = vpop.f32.mrf.mxu0
      %1397 = vdwg.mxu0
      %v1398 = vpack.c.bf16 %v775, %v774
      %v1399 = vld [vmem:[%s4 + $0x10] sm:$0xf]
      %v1400 = vld [vmem:[%s4 + $0x14] sm:$0xf]
      %v1403 = vunpack.c.l.b16 %v1399
      %v1404 = vunpack.c.l.b16 %v1400
      %v1405 = vpack.c.b16 %v1404, %v1403
      %v1408 = vsel %vm1149, %v1398, 0
      %1410 = vmatprep.subr.bf16.mxu0 0
      %1411 = vmatpush1.bf16.msra.mxu0 0
      %1412 = vmatprep.subr.bf16.mxu0 0
      %1413 = vmatpush1.bf16.msra.mxu0 0
      %1414 = vmatprep.subr.bf16.mxu0 0
      %1415 = vmatpush1.bf16.msra.mxu0 0
      %1416 = vmatprep.subr.bf16.mxu0 0
      %1417 = vmatpush1.bf16.msra.mxu0 0
      %1418 = vmatprep.subr.bf16.mxu0 0
      %1419 = vmatpush1.bf16.msra.mxu0 0
      %1420 = vmatprep.subr.bf16.mxu0 0
      %1421 = vmatpush1.bf16.msra.mxu0 0
      %1422 = vmatprep.subr.bf16.mxu0 0
      %1423 = vmatpush1.bf16.msra.mxu0 0
      %1424 = vmatprep.subr.bf16.mxu0 0
      %1425 = vmatpush1.bf16.msra.mxu0 %v1405
      %1426 = vmatprep.subr.bf16.mxu0 0
      %1427 = vmatpush2.bf16.msra.mxu0 0
      %1428 = vmatprep.subr.bf16.mxu0 0
      %1429 = vmatpush2.bf16.msra.mxu0 0
      %1430 = vmatprep.subr.bf16.mxu0 0
      %1431 = vmatpush2.bf16.msra.mxu0 0
      %1432 = vmatprep.subr.bf16.mxu0 0
      %1433 = vmatpush2.bf16.msra.mxu0 0
      %1434 = vmatprep.subr.bf16.mxu0 0
      %1435 = vmatpush2.bf16.msra.mxu0 0
      %1436 = vmatprep.subr.bf16.mxu0 0
      %1437 = vmatpush2.bf16.msra.mxu0 0
      %1438 = vmatprep.subr.bf16.mxu0 0
      %1439 = vmatpush2.bf16.msra.mxu0 0
      %1440 = vmatprep.subr.bf16.mxu0 0
      %1441 = vmatpush2.bf16.msra.mxu0 0
      %1442 = vmatprep.mubr.bf16.mxu0 0
      %1443 = vmatmul.mubr.bf16.gmra.mxu0 %v1281
      %v1444 = vpop.f32.mrf.mxu0
      %v1445 = vadd.f32 0.0, %v1444
      %v1446 = vpop.f32.mrf.mxu0
      %v1447 = vpop.f32.mrf.mxu0
      %v1448 = vadd.f32 0.0, %v1447
      %v1449 = vpop.f32.mrf.mxu0
      %1450 = vmatprep.mubr.bf16.mxu0 0
      %1451 = vmatmul.mubr.bf16.gmra.mxu0 %v1284
      %v1452 = vpop.f32.mrf.mxu0
      %v1453 = vadd.f32 0.0, %v1452
      %v1454 = vpop.f32.mrf.mxu0
      %v1455 = vpop.f32.mrf.mxu0
      %v1456 = vadd.f32 0.0, %v1455
      %v1457 = vpop.f32.mrf.mxu0
      %1458 = vmatprep.mubr.bf16.mxu0 0
      %1459 = vmatmul.mubr.bf16.gmra.mxu0 %v1287
      %v1460 = vpop.f32.mrf.mxu0
      %v1461 = vadd.f32 0.0, %v1460
      %v1462 = vpop.f32.mrf.mxu0
      %v1463 = vpop.f32.mrf.mxu0
      %v1464 = vadd.f32 0.0, %v1463
      %v1465 = vpop.f32.mrf.mxu0
      %1466 = vmatprep.mubr.bf16.mxu0 0
      %1467 = vmatmul.mubr.bf16.gmra.mxu0 %v1290
      %v1468 = vpop.f32.mrf.mxu0
      %v1469 = vadd.f32 0.0, %v1468
      %v1470 = vpop.f32.mrf.mxu0
      %v1471 = vpop.f32.mrf.mxu0
      %v1472 = vadd.f32 0.0, %v1471
      %v1473 = vpop.f32.mrf.mxu0
      %1474 = vmatprep.mubr.bf16.mxu0 0
      %1475 = vmatmul.mubr.bf16.gmra.mxu0 %v1293
      %v1476 = vpop.f32.mrf.mxu0
      %v1477 = vadd.f32 0.0, %v1476
      %v1478 = vpop.f32.mrf.mxu0
      %v1479 = vpop.f32.mrf.mxu0
      %v1480 = vadd.f32 0.0, %v1479
      %v1481 = vpop.f32.mrf.mxu0
      %1482 = vmatprep.mubr.bf16.mxu0 0
      %1483 = vmatmul.mubr.bf16.gmra.mxu0 %v1296
      %v1484 = vpop.f32.mrf.mxu0
      %v1485 = vadd.f32 0.0, %v1484
      %v1486 = vpop.f32.mrf.mxu0
      %v1487 = vpop.f32.mrf.mxu0
      %v1488 = vadd.f32 0.0, %v1487
      %v1489 = vpop.f32.mrf.mxu0
      %1490 = vmatprep.mubr.bf16.mxu0 0
      %1491 = vmatmul.mubr.bf16.gmra.mxu0 %v1299
      %v1492 = vpop.f32.mrf.mxu0
      %v1493 = vadd.f32 0.0, %v1492
      %v1494 = vpop.f32.mrf.mxu0
      %v1495 = vpop.f32.mrf.mxu0
      %v1496 = vadd.f32 0.0, %v1495
      %v1497 = vpop.f32.mrf.mxu0
      %1498 = vmatprep.mubr.bf16.mxu0 0
      %1499 = vmatmul.mubr.bf16.gmra.mxu0 %v1408
      %v1500 = vpop.f32.mrf.mxu0
      %v1501 = vadd.f32 0.0, %v1500
      %v1502 = vpop.f32.mrf.mxu0
      %v1503 = vpop.f32.mrf.mxu0
      %v1504 = vadd.f32 0.0, %v1503
      %v1505 = vpop.f32.mrf.mxu0
      %1506 = vdwg.mxu0
      %v1507 = vadd.f32 %v1336, %v1445
      %v1508 = vadd.f32 %v1339, %v1448
      %v1509 = vadd.f32 %v1344, %v1453
      %v1510 = vadd.f32 %v1347, %v1456
      %v1511 = vadd.f32 %v1352, %v1461
      %v1512 = vadd.f32 %v1355, %v1464
      %v1513 = vadd.f32 %v1360, %v1469
      %v1514 = vadd.f32 %v1363, %v1472
      %v1515 = vadd.f32 %v1368, %v1477
      %v1516 = vadd.f32 %v1371, %v1480
      %v1517 = vadd.f32 %v1376, %v1485
      %v1518 = vadd.f32 %v1379, %v1488
      %v1519 = vadd.f32 %v1384, %v1493
      %v1520 = vadd.f32 %v1387, %v1496
      %v1521 = vadd.f32 %v1392, %v1501
      %v1522 = vadd.f32 %v1395, %v1504
      %v1523 = vpack.c.bf16 %v1108, %v1107
      %v1524 = vpack.c.bf16 %v1110, %v1109
      %v1525 = vpack.c.bf16 %v1112, %v1111
      %v1526 = vpack.c.bf16 %v1114, %v1113
      %v1527 = vpack.c.bf16 %v1116, %v1115
      %v1528 = vpack.c.bf16 %v1118, %v1117
      %v1529 = vpack.c.bf16 %v1120, %v1119
      %v1530 = vpack.c.bf16 %v1122, %v1121
      %v1531 = vld [vmem:[%s4 + $0x18] sm:$0xf]
      %v1532 = vld [vmem:[%s4 + $0x1c] sm:$0xf]
      %v1535 = vunpack.c.l.b16 %v1531
      %v1536 = vunpack.c.l.b16 %v1532
      %v1537 = vpack.c.b16 %v1536, %v1535
      %v1540 = vsel %vm1149, %v1523, 0
      %v1543 = vsel %vm1149, %v1524, 0
      %v1546 = vsel %vm1149, %v1525, 0
      %v1549 = vsel %vm1149, %v1526, 0
      %v1552 = vsel %vm1149, %v1527, 0
      %v1555 = vsel %vm1149, %v1528, 0
      %v1558 = vsel %vm1149, %v1529, 0
      %v1561 = vsel %vm1149, %v1530, 0
      %1563 = vmatprep.subr.bf16.mxu0 0
      %1564 = vmatpush1.bf16.msra.mxu0 0
      %1565 = vmatprep.subr.bf16.mxu0 0
      %1566 = vmatpush1.bf16.msra.mxu0 0
      %1567 = vmatprep.subr.bf16.mxu0 0
      %1568 = vmatpush1.bf16.msra.mxu0 0
      %1569 = vmatprep.subr.bf16.mxu0 0
      %1570 = vmatpush1.bf16.msra.mxu0 0
      %1571 = vmatprep.subr.bf16.mxu0 0
      %1572 = vmatpush1.bf16.msra.mxu0 0
      %1573 = vmatprep.subr.bf16.mxu0 0
      %1574 = vmatpush1.bf16.msra.mxu0 0
      %1575 = vmatprep.subr.bf16.mxu0 0
      %1576 = vmatpush1.bf16.msra.mxu0 0
      %1577 = vmatprep.subr.bf16.mxu0 0
      %1578 = vmatpush1.bf16.msra.mxu0 %v1537
      %1579 = vmatprep.subr.bf16.mxu0 0
      %1580 = vmatpush2.bf16.msra.mxu0 0
      %1581 = vmatprep.subr.bf16.mxu0 0
      %1582 = vmatpush2.bf16.msra.mxu0 0
      %1583 = vmatprep.subr.bf16.mxu0 0
      %1584 = vmatpush2.bf16.msra.mxu0 0
      %1585 = vmatprep.subr.bf16.mxu0 0
      %1586 = vmatpush2.bf16.msra.mxu0 0
      %1587 = vmatprep.subr.bf16.mxu0 0
      %1588 = vmatpush2.bf16.msra.mxu0 0
      %1589 = vmatprep.subr.bf16.mxu0 0
      %1590 = vmatpush2.bf16.msra.mxu0 0
      %1591 = vmatprep.subr.bf16.mxu0 0
      %1592 = vmatpush2.bf16.msra.mxu0 0
      %1593 = vmatprep.subr.bf16.mxu0 0
      %1594 = vmatpush2.bf16.msra.mxu0 0
      %1595 = vmatprep.mubr.bf16.mxu0 0
      %1596 = vmatmul.mubr.bf16.gmra.mxu0 %v1540
      %v1597 = vpop.f32.mrf.mxu0
      %v1598 = vadd.f32 0.0, %v1597
      %v1599 = vpop.f32.mrf.mxu0
      %v1600 = vpop.f32.mrf.mxu0
      %v1601 = vadd.f32 0.0, %v1600
      %v1602 = vpop.f32.mrf.mxu0
      %1603 = vmatprep.mubr.bf16.mxu0 0
      %1604 = vmatmul.mubr.bf16.gmra.mxu0 %v1543
      %v1605 = vpop.f32.mrf.mxu0
      %v1606 = vadd.f32 0.0, %v1605
      %v1607 = vpop.f32.mrf.mxu0
      %v1608 = vpop.f32.mrf.mxu0
      %v1609 = vadd.f32 0.0, %v1608
      %v1610 = vpop.f32.mrf.mxu0
      %1611 = vmatprep.mubr.bf16.mxu0 0
      %1612 = vmatmul.mubr.bf16.gmra.mxu0 %v1546
      %v1613 = vpop.f32.mrf.mxu0
      %v1614 = vadd.f32 0.0, %v1613
      %v1615 = vpop.f32.mrf.mxu0
      %v1616 = vpop.f32.mrf.mxu0
      %v1617 = vadd.f32 0.0, %v1616
      %v1618 = vpop.f32.mrf.mxu0
      %1619 = vmatprep.mubr.bf16.mxu0 0
      %1620 = vmatmul.mubr.bf16.gmra.mxu0 %v1549
      %v1621 = vpop.f32.mrf.mxu0
      %v1622 = vadd.f32 0.0, %v1621
      %v1623 = vpop.f32.mrf.mxu0
      %v1624 = vpop.f32.mrf.mxu0
      %v1625 = vadd.f32 0.0, %v1624
      %v1626 = vpop.f32.mrf.mxu0
      %1627 = vmatprep.mubr.bf16.mxu0 0
      %1628 = vmatmul.mubr.bf16.gmra.mxu0 %v1552
      %v1629 = vpop.f32.mrf.mxu0
      %v1630 = vadd.f32 0.0, %v1629
      %v1631 = vpop.f32.mrf.mxu0
      %v1632 = vpop.f32.mrf.mxu0
      %v1633 = vadd.f32 0.0, %v1632
      %v1634 = vpop.f32.mrf.mxu0
      %1635 = vmatprep.mubr.bf16.mxu0 0
      %1636 = vmatmul.mubr.bf16.gmra.mxu0 %v1555
      %v1637 = vpop.f32.mrf.mxu0
      %v1638 = vadd.f32 0.0, %v1637
      %v1639 = vpop.f32.mrf.mxu0
      %v1640 = vpop.f32.mrf.mxu0
      %v1641 = vadd.f32 0.0, %v1640
      %v1642 = vpop.f32.mrf.mxu0
      %1643 = vmatprep.mubr.bf16.mxu0 0
      %1644 = vmatmul.mubr.bf16.gmra.mxu0 %v1558
      %v1645 = vpop.f32.mrf.mxu0
      %v1646 = vadd.f32 0.0, %v1645
      %v1647 = vpop.f32.mrf.mxu0
      %v1648 = vpop.f32.mrf.mxu0
      %v1649 = vadd.f32 0.0, %v1648
      %v1650 = vpop.f32.mrf.mxu0
      %1651 = vmatprep.mubr.bf16.mxu0 0
      %1652 = vmatmul.mubr.bf16.gmra.mxu0 %v1561
      %v1653 = vpop.f32.mrf.mxu0
      %v1654 = vadd.f32 0.0, %v1653
      %v1655 = vpop.f32.mrf.mxu0
      %v1656 = vpop.f32.mrf.mxu0
      %v1657 = vadd.f32 0.0, %v1656
      %v1658 = vpop.f32.mrf.mxu0
      %1659 = vdwg.mxu0
      %v1660 = vadd.f32 %v1507, %v1598
      %v1661 = vadd.f32 %v1508, %v1601
      %v1662 = vadd.f32 %v1509, %v1606
      %v1663 = vadd.f32 %v1510, %v1609
      %v1664 = vadd.f32 %v1511, %v1614
      %v1665 = vadd.f32 %v1512, %v1617
      %v1666 = vadd.f32 %v1513, %v1622
      %v1667 = vadd.f32 %v1514, %v1625
      %v1668 = vadd.f32 %v1515, %v1630
      %v1669 = vadd.f32 %v1516, %v1633
      %v1670 = vadd.f32 %v1517, %v1638
      %v1671 = vadd.f32 %v1518, %v1641
      %v1672 = vadd.f32 %v1519, %v1646
      %v1673 = vadd.f32 %v1520, %v1649
      %v1674 = vadd.f32 %v1521, %v1654
      %v1675 = vadd.f32 %v1522, %v1657
      %v1676 = vld [vmem:[%s5] sm:$0x1]
      %v1678 = vlaneseq
      %v1679 = vshrl.u32 %v1678, 7
      %v1680 = vsub.s32 0, %v1679
      %v1681 = vrot.slane %v1676, %v1680
      %v1683 = vadd.f32 %v1660, %v1681
      %v1684 = vadd.f32 %v1661, %v1681
      %v1685 = vadd.f32 %v1662, %v1681
      %v1686 = vadd.f32 %v1663, %v1681
      %v1687 = vadd.f32 %v1664, %v1681
      %v1688 = vadd.f32 %v1665, %v1681
      %v1689 = vadd.f32 %v1666, %v1681
      %v1690 = vadd.f32 %v1667, %v1681
      %v1691 = vadd.f32 %v1668, %v1681
      %v1692 = vadd.f32 %v1669, %v1681
      %v1693 = vadd.f32 %v1670, %v1681
      %v1694 = vadd.f32 %v1671, %v1681
      %v1695 = vadd.f32 %v1672, %v1681
      %v1696 = vadd.f32 %v1673, %v1681
      %v1697 = vadd.f32 %v1674, %v1681
      %v1698 = vadd.f32 %v1675, %v1681
      %v1699 = vmax.f32 %v1683, 0.0
      %v1700 = vmax.f32 %v1684, 0.0
      %v1701 = vmax.f32 %v1685, 0.0
      %v1702 = vmax.f32 %v1686, 0.0
      %v1703 = vmax.f32 %v1687, 0.0
      %v1704 = vmax.f32 %v1688, 0.0
      %v1705 = vmax.f32 %v1689, 0.0
      %v1706 = vmax.f32 %v1690, 0.0
      %v1707 = vmax.f32 %v1691, 0.0
      %v1708 = vmax.f32 %v1692, 0.0
      %v1709 = vmax.f32 %v1693, 0.0
      %v1710 = vmax.f32 %v1694, 0.0
      %v1711 = vmax.f32 %v1695, 0.0
      %v1712 = vmax.f32 %v1696, 0.0
      %v1713 = vmax.f32 %v1697, 0.0
      %v1714 = vmax.f32 %v1698, 0.0
      %v1715 = vpack.c.bf16 %v1700, %v1699
      %v1716 = vpack.c.bf16 %v1702, %v1701
      %v1717 = vpack.c.bf16 %v1704, %v1703
      %v1718 = vpack.c.bf16 %v1706, %v1705
      %v1719 = vpack.c.bf16 %v1708, %v1707
      %v1720 = vpack.c.bf16 %v1710, %v1709
      %v1721 = vpack.c.bf16 %v1712, %v1711
      %v1722 = vpack.c.bf16 %v1714, %v1713
      %v1723 = vld [vmem:[%s6] sm:$0xf]
      %v1724 = vld [vmem:[%s6 + $0x4] sm:$0xf]
      %v1725 = vld [vmem:[%s6 + $0x8] sm:$0xf]
      %v1726 = vld [vmem:[%s6 + $0xc] sm:$0xf]
      %v1727 = vld [vmem:[%s6 + $0x10] sm:$0xf]
      %v1728 = vld [vmem:[%s6 + $0x14] sm:$0xf]
      %v1729 = vld [vmem:[%s6 + $0x18] sm:$0xf]
      %v1730 = vld [vmem:[%s6 + $0x1c] sm:$0xf]
      %v1731 = vld [vmem:[%s7] sm:$0x1]
      %v1733 = vlaneseq
      %v1734 = vshrl.u32 %v1733, 7
      %v1735 = vsub.s32 0, %v1734
      %v1736 = vrot.slane %v1731, %v1735
      %v1746 = vunpack.c.l.b16 %v1723
      %v1747 = vunpack.c.l.b16 %v1724
      %v1748 = vunpack.c.l.b16 %v1725
      %v1749 = vunpack.c.l.b16 %v1726
      %v1750 = vunpack.c.l.b16 %v1727
      %v1751 = vunpack.c.l.b16 %v1728
      %v1752 = vunpack.c.l.b16 %v1729
      %v1753 = vunpack.c.l.b16 %v1730
      %v1754 = vpack.c.b16 %v1747, %v1746
      %v1755 = vpack.c.b16 %v1749, %v1748
      %v1756 = vpack.c.b16 %v1751, %v1750
      %v1757 = vpack.c.b16 %v1753, %v1752
      %v1763 = vsel %vm513, %v1715, 0
      %v1766 = vsel %vm513, %v1716, 0
      %v1769 = vsel %vm513, %v1717, 0
      %v1772 = vsel %vm513, %v1718, 0
      %v1775 = vsel %vm513, %v1719, 0
      %v1778 = vsel %vm513, %v1720, 0
      %v1781 = vsel %vm513, %v1721, 0
      %v1784 = vsel %vm513, %v1722, 0
      %1786 = vmatprep.subr.bf16.mxu0 0
      %1787 = vmatpush1.bf16.msra.mxu0 0
      %1788 = vmatprep.subr.bf16.mxu0 0
      %1789 = vmatpush1.bf16.msra.mxu0 0
      %1790 = vmatprep.subr.bf16.mxu0 0
      %1791 = vmatpush1.bf16.msra.mxu0 0
      %1792 = vmatprep.subr.bf16.mxu0 0
      %1793 = vmatpush1.bf16.msra.mxu0 0
      %1794 = vmatprep.subr.bf16.mxu0 0
      %1795 = vmatpush1.bf16.msra.mxu0 %v1757
      %1796 = vmatprep.subr.bf16.mxu0 0
      %1797 = vmatpush1.bf16.msra.mxu0 %v1756
      %1798 = vmatprep.subr.bf16.mxu0 0
      %1799 = vmatpush1.bf16.msra.mxu0 %v1755
      %1800 = vmatprep.subr.bf16.mxu0 0
      %1801 = vmatpush1.bf16.msra.mxu0 %v1754
      %1802 = vmatprep.subr.bf16.mxu0 0
      %1803 = vmatpush2.bf16.msra.mxu0 0
      %1804 = vmatprep.subr.bf16.mxu0 0
      %1805 = vmatpush2.bf16.msra.mxu0 0
      %1806 = vmatprep.subr.bf16.mxu0 0
      %1807 = vmatpush2.bf16.msra.mxu0 0
      %1808 = vmatprep.subr.bf16.mxu0 0
      %1809 = vmatpush2.bf16.msra.mxu0 0
      %1810 = vmatprep.subr.bf16.mxu0 0
      %1811 = vmatpush2.bf16.msra.mxu0 0
      %1812 = vmatprep.subr.bf16.mxu0 0
      %1813 = vmatpush2.bf16.msra.mxu0 0
      %1814 = vmatprep.subr.bf16.mxu0 0
      %1815 = vmatpush2.bf16.msra.mxu0 0
      %1816 = vmatprep.subr.bf16.mxu0 0
      %1817 = vmatpush2.bf16.msra.mxu0 0
      %1818 = vmatprep.mubr.bf16.mxu0 0
      %1819 = vmatmul.mubr.bf16.gmra.mxu0 %v1763
      %v1820 = vpop.f32.mrf.mxu0
      %v1821 = vadd.f32 %v1736, %v1820
      %v1822 = vpop.f32.mrf.mxu0
      %v1823 = vpop.f32.mrf.mxu0
      %v1824 = vadd.f32 %v1736, %v1823
      %v1825 = vpop.f32.mrf.mxu0
      %1826 = vmatprep.mubr.bf16.mxu0 0
      %1827 = vmatmul.mubr.bf16.gmra.mxu0 %v1766
      %v1828 = vpop.f32.mrf.mxu0
      %v1829 = vadd.f32 %v1736, %v1828
      %v1830 = vpop.f32.mrf.mxu0
      %v1831 = vpop.f32.mrf.mxu0
      %v1832 = vadd.f32 %v1736, %v1831
      %v1833 = vpop.f32.mrf.mxu0
      %1834 = vmatprep.mubr.bf16.mxu0 0
      %1835 = vmatmul.mubr.bf16.gmra.mxu0 %v1769
      %v1836 = vpop.f32.mrf.mxu0
      %v1837 = vadd.f32 %v1736, %v1836
      %v1838 = vpop.f32.mrf.mxu0
      %v1839 = vpop.f32.mrf.mxu0
      %v1840 = vadd.f32 %v1736, %v1839
      %v1841 = vpop.f32.mrf.mxu0
      %1842 = vmatprep.mubr.bf16.mxu0 0
      %1843 = vmatmul.mubr.bf16.gmra.mxu0 %v1772
      %v1844 = vpop.f32.mrf.mxu0
      %v1845 = vadd.f32 %v1736, %v1844
      %v1846 = vpop.f32.mrf.mxu0
      %v1847 = vpop.f32.mrf.mxu0
      %v1848 = vadd.f32 %v1736, %v1847
      %v1849 = vpop.f32.mrf.mxu0
      %1850 = vmatprep.mubr.bf16.mxu0 0
      %1851 = vmatmul.mubr.bf16.gmra.mxu0 %v1775
      %v1852 = vpop.f32.mrf.mxu0
      %v1853 = vadd.f32 %v1736, %v1852
      %v1854 = vpop.f32.mrf.mxu0
      %v1855 = vpop.f32.mrf.mxu0
      %v1856 = vadd.f32 %v1736, %v1855
      %v1857 = vpop.f32.mrf.mxu0
      %1858 = vmatprep.mubr.bf16.mxu0 0
      %1859 = vmatmul.mubr.bf16.gmra.mxu0 %v1778
      %v1860 = vpop.f32.mrf.mxu0
      %v1861 = vadd.f32 %v1736, %v1860
      %v1862 = vpop.f32.mrf.mxu0
      %v1863 = vpop.f32.mrf.mxu0
      %v1864 = vadd.f32 %v1736, %v1863
      %v1865 = vpop.f32.mrf.mxu0
      %1866 = vmatprep.mubr.bf16.mxu0 0
      %1867 = vmatmul.mubr.bf16.gmra.mxu0 %v1781
      %v1868 = vpop.f32.mrf.mxu0
      %v1869 = vadd.f32 %v1736, %v1868
      %v1870 = vpop.f32.mrf.mxu0
      %v1871 = vpop.f32.mrf.mxu0
      %v1872 = vadd.f32 %v1736, %v1871
      %v1873 = vpop.f32.mrf.mxu0
      %1874 = vmatprep.mubr.bf16.mxu0 0
      %1875 = vmatmul.mubr.bf16.gmra.mxu0 %v1784
      %v1876 = vpop.f32.mrf.mxu0
      %v1877 = vadd.f32 %v1736, %v1876
      %v1878 = vpop.f32.mrf.mxu0
      %v1879 = vpop.f32.mrf.mxu0
      %v1880 = vadd.f32 %v1736, %v1879
      %v1881 = vpop.f32.mrf.mxu0
      %1882 = vdwg.mxu0
      %v1883 = vmax.f32 %v1821, 0.0
      %v1884 = vmax.f32 %v1824, 0.0
      %v1885 = vmax.f32 %v1829, 0.0
      %v1886 = vmax.f32 %v1832, 0.0
      %v1887 = vmax.f32 %v1837, 0.0
      %v1888 = vmax.f32 %v1840, 0.0
      %v1889 = vmax.f32 %v1845, 0.0
      %v1890 = vmax.f32 %v1848, 0.0
      %v1891 = vmax.f32 %v1853, 0.0
      %v1892 = vmax.f32 %v1856, 0.0
      %v1893 = vmax.f32 %v1861, 0.0
      %v1894 = vmax.f32 %v1864, 0.0
      %v1895 = vmax.f32 %v1869, 0.0
      %v1896 = vmax.f32 %v1872, 0.0
      %v1897 = vmax.f32 %v1877, 0.0
      %v1898 = vmax.f32 %v1880, 0.0
      %1899 = vst [vmem:[%s407] sm:$0xff] %v1883
      %1900 = vst [vmem:[%s407 + $0x8] sm:$0xff] %v1884
      %1901 = vst [vmem:[%s407 + $0x10] sm:$0xff] %v1885
      %1902 = vst [vmem:[%s407 + $0x18] sm:$0xff] %v1886
      %1903 = vst [vmem:[%s407 + $0x20] sm:$0xff] %v1887
      %1904 = vst [vmem:[%s407 + $0x28] sm:$0xff] %v1888
      %1905 = vst [vmem:[%s407 + $0x30] sm:$0xff] %v1889
      %1906 = vst [vmem:[%s407 + $0x38] sm:$0xff] %v1890
      %1907 = vst [vmem:[%s407 + $0x40] sm:$0xff] %v1891
      %1908 = vst [vmem:[%s407 + $0x48] sm:$0xff] %v1892
      %1909 = vst [vmem:[%s407 + $0x50] sm:$0xff] %v1893
      %1910 = vst [vmem:[%s407 + $0x58] sm:$0xff] %v1894
      %1911 = vst [vmem:[%s407 + $0x60] sm:$0xff] %v1895
      %1912 = vst [vmem:[%s407 + $0x68] sm:$0xff] %v1896
      %1913 = vst [vmem:[%s407 + $0x70] sm:$0xff] %v1897
      %1914 = vst [vmem:[%s407 + $0x78] sm:$0xff] %v1898
      %s1915 = smul.u32 16, %s24
      %p1916 = scmp.lt.s32.totalorder %s23, 1
      %s1917 = scalar_select %p1916, %s23, 1
      %p1918 = scmp.lt.s32.totalorder %s1915, 31
      %s1919 = scalar_select %p1918, %s1915, 31
      %s1920 = smul.addr %s1917, 32
      %s1921 = sadd.s32 %s1919, %s1920
      %s1922 = smul.addr %s1921, 8
      %s1923 = scalar_lea.vmem %s8, %s1922
      // Predicated region
      $region53: #{decoder_block_forward.1} parent=51 // pred_check
        %p1924 = pneg %p241
      $region54: #{decoder_block_forward.1} parent=51 // pred_check_branch
        %1926 = sbr.rel (%p1924) target = $region56
      $region55: #{decoder_block_forward.1} parent=51 // pred_region
        %s1927 = smul.u32 16, %s24
      $region56: #{decoder_block_forward.1} parent=51 // pred_fallthru
        _
    $region52: #{decoder_block_forward.1} parent=5 // pred_fallthru
      _
    %p1928 = scmp.le.s32.totalorder 2, %s14
    // Predicated region
    $region57: #{decoder_block_forward.1} parent=5 // pred_check
      %p1929 = pneg %p1928
    $region58: #{decoder_block_forward.1} parent=5 // pred_check_branch
      %1931 = sbr.rel (%p1929) target = $region60
    $region59: #{decoder_block_forward.1} parent=5 // pred_region
      %s1932 = ssub.s32 %s14, 2
      // Predicated region
      $region61: #{decoder_block_forward.1} parent=59 // pred_check
        %p1933 = pneg %p247
      $region62: #{decoder_block_forward.1} parent=59 // pred_check_branch
        %1935 = sbr.rel (%p1933) target = $region64
      $region63: #{decoder_block_forward.1} parent=59 // pred_region
        %s1936 = smul.u32 16, %s26
        %p1937 = scmp.lt.s32.totalorder %s25, 1
        %s1938 = scalar_select %p1937, %s25, 1
        %p1939 = scmp.lt.s32.totalorder %s1936, 31
        %s1940 = scalar_select %p1939, %s1936, 31
        %s1941 = smul.addr %s1938, 32
        %s1942 = sadd.s32 %s1940, %s1941
        %s1943 = smul.addr %s1942, 8
        %s1944 = scalar_lea.vmem %s8, %s1943
      $region64: #{decoder_block_forward.1} parent=59 // pred_fallthru
        _
    $region60: #{decoder_block_forward.1} parent=5 // pred_fallthru
      _
  $region6: #{decoder_block_forward.1} parent=0 // loop_footer
    %s18 = sadd.s32 1, %s14
  $region7: #{decoder_block_forward.1} parent=0 // loop_footer_branch
    %13 = sbr.rel target = $region3
  $region8: #{decoder_block_forward.1} parent=0 // loop_exit
    _

</llo_original>
